<compile_context>
chip_gen: v6e
topology: v6e:2x2x1
jax: 0.10.0
libtpu: 0.0.40
codegen_flags: <defaults>
</compile_context>

<pallas_src>
import functools

import jax
import jax.numpy as jnp
from jax import lax
from jax.experimental import pallas as pl
from jax.experimental.pallas import tpu as pltpu

_BIG = 1e30          # sentinel added to squared norms of padded rows/columns
_LANE = 128
_SUBLANE = 8


def _round_up(x, m):
    return (x + m - 1) // m * m


def _vmem_limit_bytes():
    """Generation-aware VMEM budget: ~3/4 of physical, capped at 96 MiB.

    v5e/v6e (128 MiB physical) -> 96 MiB; v7x (64 MiB) -> 48 MiB.
    """
    try:
        phys = pltpu.get_tpu_info().vmem_capacity_bytes
        return int(min(phys * 3 // 4, 96 * 1024 * 1024))
    except Exception:
        return 48 * 1024 * 1024   # safe even on v7x's 64 MiB VMEM


def _detect_num_tensorcores():
    """TensorCores to shard the query axis over (2 on v7x megacore, else 1)."""
    try:
        info = pltpu.get_tpu_info()
        for name in ("num_cores", "core_count", "tensorcore_count",
                     "num_tensor_cores"):
            v = getattr(info, name, None)
            if isinstance(v, int) and v > 0:
                return max(1, min(2, v))
    except Exception:
        pass
    try:
        v = getattr(jax.devices()[0], "num_cores", None)
        if isinstance(v, int) and v > 0:
            return max(1, min(2, v))
    except Exception:
        pass
    return 1


def _bf_match_kernel(d0_ref, d1_ref, sq0_ref, sq1_ref,
                     rowarg_ref, colarg_ref, colmin_ref,
                     *, tiles_per_core, n0_pad):
    """One query-row tile of the cross-checked brute-force matcher.

    d0_ref : (TM, Dp)   query descriptor tile (row tile c*tiles_per_core + r)
    d1_ref : (Dp, N1p)  train descriptors (resident across the whole grid)
    sq0_ref: (TM, 1)    ||d0_i||^2  (+_BIG sentinel on padded queries)
    sq1_ref: (1, N1p)   ||d1_j||^2  (+_BIG sentinel on padded train columns)
    rowarg_ref: (TM, 1)  int32 argmin_j dist[i, j]  (per-query NN)
    colarg_ref: (8, N1p) int32 argmin_i dist[i, j]  (per-core running col argmin)
    colmin_ref: (8, N1p) f32   per-core running column minimum
    """
    c = pl.program_id(0)          # TensorCore / query-half index ("parallel")
    r = pl.program_id(1)          # query row tile within this core ("arbitrary")

    @pl.when(r == 0)
    def _init():
        colmin_ref[...] = jnp.full(colmin_ref.shape, jnp.inf, colmin_ref.dtype)
        colarg_ref[...] = jnp.zeros(colarg_ref.shape, colarg_ref.dtype)

    d0 = d0_ref[...]                       # (TM, Dp)
    d1 = d1_ref[...]                       # (Dp, N1p)

    # Canonical (TM, D) x (D, N1p) MXU contraction (no in-kernel transpose).
    cross = lax.dot_general(d0, d1, (((1,), (0,)), ((), ())),
                            preferred_element_type=jnp.float32)     # (TM, N1p)

    # Squared L2 distance (monotone in NORM_L2 -> identical argmin ordering).
    dist = sq0_ref[...] + sq1_ref[...] - 2.0 * cross                # (TM, N1p)
    tm, n1p = dist.shape

    # Narrow iotas only; jnp.where broadcasts them against dist (avoids two
    # full (TM, N1p) int32 planes per grid step).
    col_ids = lax.broadcasted_iota(jnp.int32, (1, n1p), 1)          # (1, N1p)
    row_off = (c * tiles_per_core + r) * tm
    row_ids = lax.broadcasted_iota(jnp.int32, (tm, 1), 0) + row_off  # (TM, 1)

    # Per-query nearest neighbour (first index on ties, like cv2 / jnp.argmin).
    row_min = jnp.min(dist, axis=1, keepdims=True)                  # (TM, 1)
    rowarg_ref[...] = jnp.min(jnp.where(dist == row_min, col_ids, n1p),
                              axis=1, keepdims=True).astype(jnp.int32)

    # Per-train nearest neighbour: reduce the tile over its rows, fold into the
    # running accumulators.  Strict '<' keeps the earlier (lower-index) row on
    # cross-tile ties -> first-index argmin semantics.
    tile_min = jnp.min(dist, axis=0, keepdims=True)                 # (1, N1p)
    tile_arg = jnp.min(jnp.where(dist == tile_min, row_ids, n0_pad),
                       axis=0, keepdims=True).astype(jnp.int32)     # (1, N1p)
    better = tile_min < colmin_ref[...]                              # (8, N1p)
    colmin_ref[...] = jnp.where(better, tile_min, colmin_ref[...])
    colarg_ref[...] = jnp.where(better, tile_arg, colarg_ref[...])


def bruteforce_forward(data, *, row_tile=256, lane_align=256,
                       num_cores=None, matmul_dtype=None):
    """JAX/Pallas equivalent of BruteForce.forward (non-'ransac' path)."""
    desc0, desc1 = data['descriptors0'], data['descriptors1']   # (1, D, N)
    kpts0, kpts1 = data['keypoints0'], data['keypoints1']       # (1, N, 2)

    # Empty-keypoint early-out (static shapes in JAX).
    if kpts0.shape[1] == 0 or kpts1.shape[1] == 0:
        shape0, shape1 = kpts0.shape[:-1], kpts1.shape[:-1]
        return {
            'matches0': jnp.full(shape0, -1, dtype=jnp.int32),
            'matches1': jnp.full(shape1, -1, dtype=jnp.int32),
            'matching_scores0': jnp.zeros(shape0, dtype=jnp.float32),
            'matching_scores1': jnp.zeros(shape1, dtype=jnp.float32),
        }

    # Queries row-major (N0, D): one-time HBM-side transpose so the kernel runs
    # the canonical contraction.  Train descriptors stay channel-first (D, N1).
    d0 = jnp.transpose(desc0[0].astype(jnp.float32))   # (N0, D)
    d1 = desc1[0].astype(jnp.float32)                  # (D, N1)
    n0, d = d0.shape
    _, n1 = d1.shape

    if num_cores is None:
        num_cores = _detect_num_tensorcores()

    tm = min(row_tile, _round_up(n0, _SUBLANE))
    d_pad = _round_up(d, _LANE)
    n1_pad = _round_up(n1, max(lane_align, _LANE))
    n0_pad = _round_up(n0, tm * num_cores)
    tiles_per_core = n0_pad // (tm * num_cores)

    # Squared norms (tiny XLA reductions); padded entries carry a huge sentinel
    # so padded queries / train columns can never win any argmin.
    sq0 = jnp.sum(d0 * d0, axis=1)                                   # (N0,)
    sq1 = jnp.sum(d1 * d1, axis=0)                                   # (N1,)
    comp_dtype = jnp.float32 if matmul_dtype is None else matmul_dtype
    d0p = jnp.pad(d0, ((0, n0_pad - n0), (0, d_pad - d))).astype(comp_dtype)
    d1p = jnp.pad(d1, ((0, d_pad - d), (0, n1_pad - n1))).astype(comp_dtype)
    sq0p = jnp.pad(sq0, (0, n0_pad - n0), constant_values=_BIG)[:, None]  # (N0p, 1)
    sq1p = jnp.pad(sq1, (0, n1_pad - n1), constant_values=_BIG)[None, :]  # (1, N1p)

    kernel = functools.partial(_bf_match_kernel,
                               tiles_per_core=tiles_per_core, n0_pad=n0_pad)

    itemsize = jnp.dtype(comp_dtype).itemsize
    flops = int(2 * n0_pad * n1_pad * d_pad + 8 * n0_pad * n1_pad)
    bytes_accessed = int(itemsize * (d0p.size + d1p.size)
                         + 4 * (sq0p.size + sq1p.size)
                         + 4 * (n0_pad + 2 * num_cores * _SUBLANE * n1_pad))

    idx_row = lambda c, r: (c * tiles_per_core + r, 0)
    idx_resident = lambda c, r: (0, 0)
    idx_core = lambda c, r: (c, 0)
    vmem_limit = _vmem_limit_bytes()

    def call(buffered_resident):
        # Resident operands (constant index_map) don't need double buffers.
        resident_kwargs = (
            dict(pipeline_mode=pl.Buffered(1)) if buffered_resident else {})
        return pl.pallas_call(
            kernel,
            grid_spec=pltpu.PrefetchScalarGridSpec(
                num_scalar_prefetch=0,
                grid=(num_cores, tiles_per_core),
                in_specs=[
                    pl.BlockSpec((tm, d_pad), idx_row),                # d0 row tile
                    pl.BlockSpec((d_pad, n1_pad), idx_resident,
                                 **resident_kwargs),                   # d1 (resident)
                    pl.BlockSpec((tm, 1), idx_row),                    # sq0 tile
                    pl.BlockSpec((1, n1_pad), idx_resident,
                                 **resident_kwargs),                   # sq1 (resident)
                ],
                out_specs=(
                    pl.BlockSpec((tm, 1), idx_row),                    # row argmin
                    pl.BlockSpec((_SUBLANE, n1_pad), idx_core),        # col argmin
                    pl.BlockSpec((_SUBLANE, n1_pad), idx_core),        # col min
                ),
            ),
            out_shape=(
                jax.ShapeDtypeStruct((n0_pad, 1), jnp.int32),
                jax.ShapeDtypeStruct((num_cores * _SUBLANE, n1_pad), jnp.int32),
                jax.ShapeDtypeStruct((num_cores * _SUBLANE, n1_pad), jnp.float32),
            ),
            compiler_params=pltpu.CompilerParams(
                # Leading axis shards query-row halves across TensorCores
                # (v7x); the row-tile axis carries the column accumulators so
                # it stays "arbitrary".
                dimension_semantics=("parallel", "arbitrary"),
                vmem_limit_bytes=vmem_limit,
            ),
            cost_estimate=pl.CostEstimate(
                flops=flops, transcendentals=0, bytes_accessed=bytes_accessed),
        )(d0p, d1p, sq0p, sq1p)

    try:
        row_arg, col_arg, col_min = call(True)
    except Exception:
        # Fallback for jax versions without per-BlockSpec pipeline_mode.
        row_arg, col_arg, col_min = call(False)

    # Merge the per-core column accumulators (strict '<' keeps the earlier
    # core, i.e. the lower query rows, on ties -> first-index semantics).
    col_arg = col_arg.reshape(num_cores, _SUBLANE, n1_pad)[:, 0, :]
    col_min = col_min.reshape(num_cores, _SUBLANE, n1_pad)[:, 0, :]
    best_arg, best_min = col_arg[0], col_min[0]
    for cidx in range(1, num_cores):
        better = col_min[cidx] < best_min
        best_arg = jnp.where(better, col_arg[cidx], best_arg)
        best_min = jnp.where(better, col_min[cidx], best_min)

    # Cheap O(N) mutual-nearest-neighbour (crossCheck) test in plain XLA.
    j = row_arg[:n0, 0]                                              # (N0,)
    mutual = best_arg[j] == jnp.arange(n0, dtype=jnp.int32)
    matches0 = jnp.where(mutual, j, -1).astype(jnp.int32)[None, :]   # (1, N0)
    # NB: strict `> 0` reproduced verbatim from the PyTorch module (a valid
    # match to train index 0 scores 0); returned as float32 so both score
    # outputs share a dtype.
    mscores0 = (matches0 > 0).astype(jnp.float32)

    # TODO(synk): RANSAC essential-matrix inlier filtering
    # (cv2.undistortPoints / cv2.findEssentialMat) has no Pallas equivalent;
    # only the matchtype != 'ransac' branch (all matches are inliers) is built.
    return {
        'matches0': matches0,                                            # (1, N0) int32
        'matches1': jnp.full(kpts1.shape[:-1], -1, dtype=jnp.int32),     # (1, N1)
        'matching_scores0': mscores0,                                    # (1, N0) f32
        'matching_scores1': jnp.zeros(kpts1.shape[:-1], jnp.float32),    # (1, N1)
    }


def _reference(d0, d1):
    """Pure-JAX reference (direct squared differences, no matmul rounding).

    d0: (N0, D) queries, d1: (N1, D) train descriptors.
    """
    diff = d0[:, None, :] - d1[None, :, :]
    dist = jnp.sum(diff * diff, axis=-1)
    row_arg = jnp.argmin(dist, axis=1)
    col_arg = jnp.argmin(dist, axis=0)
    mutual = col_arg[row_arg] == jnp.arange(d0.shape[0])
    matches0 = jnp.where(mutual, row_arg, -1).astype(jnp.int32)
    scores0 = (matches0 > 0).astype(jnp.float32)
    return matches0[None, :], scores0[None, :]


if __name__ == "__main__":
    key = jax.random.PRNGKey(0)
    k0, k1, k2, k3 = jax.random.split(key, 4)

    B, D, N0, N1 = 1, 32, 64, 48
    # Train descriptors: random.  Query descriptors: noisy copies of train
    # descriptors (wrapping around N1), so nearest neighbours are well
    # separated and the mutual cross-check path (duplicate queries -> the
    # farther one gets -1) is exercised.
    d1_t = jax.random.normal(k0, (N1, D), dtype=jnp.float32)
    d0_t = d1_t[jnp.arange(N0) % N1] + 0.25 * jax.random.normal(
        k1, (N0, D), dtype=jnp.float32)

    desc0 = jnp.transpose(d0_t)[None]          # (1, D, N0), channel-first
    desc1 = jnp.transpose(d1_t)[None]          # (1, D, N1)
    kpts0 = jax.random.uniform(k2, (B, N0, 2), dtype=jnp.float32) * 256.0
    kpts1 = jax.random.uniform(k3, (B, N1, 2), dtype=jnp.float32) * 256.0

    data = {'descriptors0': desc0, 'descriptors1': desc1,
            'keypoints0': kpts0, 'keypoints1': kpts1}

    out = bruteforce_forward(data)
    jax.block_until_ready(out)

    ref_m, ref_s = _reference(d0_t, d1_t)
    assert out['matches0'].shape == (B, N0)
    assert out['matches0'].dtype == jnp.int32
    assert out['matching_scores0'].shape == (B, N0)
    assert out['matching_scores0'].dtype == jnp.float32
    assert out['matches1'].shape == (B, N1)
    assert out['matching_scores1'].shape == (B, N1)
    assert jnp.array_equal(out['matches0'], ref_m)
    assert jnp.array_equal(out['matching_scores0'], ref_s)

    print("KERNEL_OK")
</pallas_src>

<mosaic_0001>
module attributes {stable_mosaic.version = 11 : i64} {
  func.func @_bf_match_kernel(%arg0: i32, %arg1: i32, %arg2: memref<64x128xf32, #tpu.memory_space<vmem>>, %arg3: memref<128x256xf32, #tpu.memory_space<vmem>>, %arg4: memref<64x1xf32, #tpu.memory_space<vmem>>, %arg5: memref<1x256xf32, #tpu.memory_space<vmem>>, %arg6: memref<64x1xi32, #tpu.memory_space<vmem>>, %arg7: memref<8x256xi32, #tpu.memory_space<vmem>>, %arg8: memref<8x256xf32, #tpu.memory_space<vmem>>) attributes {dimension_semantics = [#tpu.dimension_semantics<parallel>, #tpu.dimension_semantics<arbitrary>], iteration_bounds = array<i64: 1, 1>, scalar_prefetch = 0 : i64, scratch_operands = 0 : i64, tpu.core_type = #tpu.core_type<tc>, window_params = [{transform_indices = @transform_0, window_bounds = array<i64: 64, 128>}, {pipeline_mode = #tpu.pipeline_mode<synchronous>, transform_indices = @transform_1, window_bounds = array<i64: 128, 256>}, {transform_indices = @transform_2, window_bounds = array<i64: 64, 1>}, {pipeline_mode = #tpu.pipeline_mode<synchronous>, transform_indices = @transform_3, window_bounds = array<i64: 1, 256>}, {transform_indices = @transform_4, window_bounds = array<i64: 64, 1>}, {transform_indices = @transform_5, window_bounds = array<i64: 8, 256>}, {transform_indices = @transform_6, window_bounds = array<i64: 8, 256>}]} {
    %c0_i32 = arith.constant 0 : i32
    %0 = arith.cmpi eq, %arg1, %c0_i32 : i32
    %1 = arith.extui %0 : i1 to i32
    %c0_i32_0 = arith.constant 0 : i32
    %2 = arith.cmpi ne, %1, %c0_i32_0 : i32
    scf.if %2 {
      %cst_26 = arith.constant 0x7F800000 : f32
      %55 = vector.broadcast %cst_26 : f32 to vector<8x256xf32>
      %c0_27 = arith.constant 0 : index
      %c0_28 = arith.constant 0 : index
      %56 = vector.load %arg8[%c0_27, %c0_28] : memref<8x256xf32, #tpu.memory_space<vmem>>, vector<8x256xf32>
      tpu.vector_store %arg8[%c0_27, %c0_28], %55 {strides = array<i32>} : memref<8x256xf32, #tpu.memory_space<vmem>>, vector<8x256xf32>,
      %c0_i32_29 = arith.constant 0 : i32
      %57 = vector.broadcast %c0_i32_29 : i32 to vector<8x256xi32>
      %c0_30 = arith.constant 0 : index
      %c0_31 = arith.constant 0 : index
      %58 = vector.load %arg7[%c0_30, %c0_31] : memref<8x256xi32, #tpu.memory_space<vmem>>, vector<8x256xi32>
      tpu.vector_store %arg7[%c0_30, %c0_31], %57 {strides = array<i32>} : memref<8x256xi32, #tpu.memory_space<vmem>>, vector<8x256xi32>,
    } else {
    }
    %c0 = arith.constant 0 : index
    %c0_1 = arith.constant 0 : index
    %3 = vector.load %arg2[%c0, %c0_1] : memref<64x128xf32, #tpu.memory_space<vmem>>, vector<64x128xf32>
    %c0_2 = arith.constant 0 : index
    %c0_3 = arith.constant 0 : index
    %4 = vector.load %arg3[%c0_2, %c0_3] : memref<128x256xf32, #tpu.memory_space<vmem>>, vector<128x256xf32>
    %cst = arith.constant dense<0.000000e+00> : vector<64x256xf32>
    %5 = tpu.matmul %3, %4, %cst {dimension_numbers = #tpu.dot_dimension_numbers<[1], [0], [0], [1], [0, 0, 1, 1], [], []>} : vector<64x128xf32>, vector<128x256xf32>, vector<64x256xf32> -> vector<64x256xf32>
    %c0_4 = arith.constant 0 : index
    %c0_5 = arith.constant 0 : index
    %6 = vector.load %arg4[%c0_4, %c0_5] : memref<64x1xf32, #tpu.memory_space<vmem>>, vector<64x1xf32>
    %c0_6 = arith.constant 0 : index
    %c0_7 = arith.constant 0 : index
    %7 = vector.load %arg5[%c0_6, %c0_7] : memref<1x256xf32, #tpu.memory_space<vmem>>, vector<1x256xf32>
    %8 = vector.broadcast %6 : vector<64x1xf32> to vector<64x256xf32>
    %9 = vector.broadcast %7 : vector<1x256xf32> to vector<64x256xf32>
    %10 = arith.addf %8, %9 : vector<64x256xf32>
    %cst_8 = arith.constant 2.000000e+00 : f32
    %11 = vector.broadcast %cst_8 : f32 to vector<64x256xf32>
    %12 = arith.mulf %11, %5 : vector<64x256xf32>
    %13 = arith.subf %10, %12 : vector<64x256xf32>
    %14 = tpu.iota {dimensions = array<i32: 1>} : vector<1x256xi32>
    %c1_i32 = arith.constant 1 : i32
    %15 = arith.muli %arg0, %c1_i32 : i32
    %16 = arith.addi %15, %arg1 : i32
    %c64_i32 = arith.constant 64 : i32
    %17 = arith.muli %16, %c64_i32 : i32
    %18 = tpu.iota {dimensions = array<i32: 0>} : vector<64x1xi32>
    %19 = vector.broadcast %17 : i32 to vector<64x1xi32>
    %20 = arith.addi %18, %19 : vector<64x1xi32>
    %cst_9 = arith.constant dense<0x7F800000> : vector<64xf32>
    %21 = vector.multi_reduction <minimumf>, %13, %cst_9 [1] : vector<64x256xf32> to vector<64xf32>
    %22 = vector.shape_cast %21 : vector<64xf32> to vector<64x1xf32>
    %23 = vector.broadcast %22 : vector<64x1xf32> to vector<64x256xf32>
    %24 = arith.cmpf oeq, %13, %23 : vector<64x256xf32>
    %c256_i32 = arith.constant 256 : i32
    %25 = vector.shape_cast %14 : vector<1x256xi32> to vector<1x256xi32>
    %26 = vector.broadcast %25 : vector<1x256xi32> to vector<64x256xi32>
    %27 = vector.broadcast %c256_i32 : i32 to vector<64x256xi32>
    %28 = arith.select %24, %26, %27 : vector<64x256xi1>, vector<64x256xi32>
    %cst_10 = arith.constant dense<2147483647> : vector<64xi32>
    %29 = vector.multi_reduction <minsi>, %28, %cst_10 [1] : vector<64x256xi32> to vector<64xi32>
    %30 = vector.shape_cast %29 : vector<64xi32> to vector<64x1xi32>
    %c0_11 = arith.constant 0 : index
    %c0_12 = arith.constant 0 : index
    %31 = vector.load %arg6[%c0_11, %c0_12] : memref<64x1xi32, #tpu.memory_space<vmem>>, vector<64x1xi32>
    tpu.vector_store %arg6[%c0_11, %c0_12], %30 {strides = array<i32>} : memref<64x1xi32, #tpu.memory_space<vmem>>, vector<64x1xi32>,
    %cst_13 = arith.constant dense<0x7F800000> : vector<256xf32>
    %32 = vector.multi_reduction <minimumf>, %13, %cst_13 [0] : vector<64x256xf32> to vector<256xf32>
    %33 = vector.shape_cast %32 : vector<256xf32> to vector<1x256xf32>
    %34 = vector.broadcast %33 : vector<1x256xf32> to vector<64x256xf32>
    %35 = arith.cmpf oeq, %13, %34 : vector<64x256xf32>
    %c64_i32_14 = arith.constant 64 : i32
    %36 = vector.shape_cast %20 : vector<64x1xi32> to vector<64x1xi32>
    %37 = vector.broadcast %36 : vector<64x1xi32> to vector<64x256xi32>
    %38 = vector.broadcast %c64_i32_14 : i32 to vector<64x256xi32>
    %39 = arith.select %35, %37, %38 : vector<64x256xi1>, vector<64x256xi32>
    %cst_15 = arith.constant dense<2147483647> : vector<256xi32>
    %40 = vector.multi_reduction <minsi>, %39, %cst_15 [0] : vector<64x256xi32> to vector<256xi32>
    %41 = vector.shape_cast %40 : vector<256xi32> to vector<1x256xi32>
    %c0_16 = arith.constant 0 : index
    %c0_17 = arith.constant 0 : index
    %42 = vector.load %arg8[%c0_16, %c0_17] : memref<8x256xf32, #tpu.memory_space<vmem>>, vector<8x256xf32>
    %43 = vector.broadcast %33 : vector<1x256xf32> to vector<8x256xf32>
    %44 = arith.cmpf olt, %43, %42 : vector<8x256xf32>
    %c0_18 = arith.constant 0 : index
    %c0_19 = arith.constant 0 : index
    %45 = vector.load %arg8[%c0_18, %c0_19] : memref<8x256xf32, #tpu.memory_space<vmem>>, vector<8x256xf32>
    %46 = vector.shape_cast %33 : vector<1x256xf32> to vector<1x256xf32>
    %47 = vector.broadcast %46 : vector<1x256xf32> to vector<8x256xf32>
    %48 = arith.select %44, %47, %45 : vector<8x256xi1>, vector<8x256xf32>
    %c0_20 = arith.constant 0 : index
    %c0_21 = arith.constant 0 : index
    %49 = vector.load %arg8[%c0_20, %c0_21] : memref<8x256xf32, #tpu.memory_space<vmem>>, vector<8x256xf32>
    tpu.vector_store %arg8[%c0_20, %c0_21], %48 {strides = array<i32>} : memref<8x256xf32, #tpu.memory_space<vmem>>, vector<8x256xf32>,
    %c0_22 = arith.constant 0 : index
    %c0_23 = arith.constant 0 : index
    %50 = vector.load %arg7[%c0_22, %c0_23] : memref<8x256xi32, #tpu.memory_space<vmem>>, vector<8x256xi32>
    %51 = vector.shape_cast %41 : vector<1x256xi32> to vector<1x256xi32>
    %52 = vector.broadcast %51 : vector<1x256xi32> to vector<8x256xi32>
    %53 = arith.select %44, %52, %50 : vector<8x256xi1>, vector<8x256xi32>
    %c0_24 = arith.constant 0 : index
    %c0_25 = arith.constant 0 : index
    %54 = vector.load %arg7[%c0_24, %c0_25] : memref<8x256xi32, #tpu.memory_space<vmem>>, vector<8x256xi32>
    tpu.vector_store %arg7[%c0_24, %c0_25], %53 {strides = array<i32>} : memref<8x256xi32, #tpu.memory_space<vmem>>, vector<8x256xi32>,
    return
  }
  func.func @transform_0(%arg0: i32, %arg1: i32) -> (i32, i32) {
    %c1_i32 = arith.constant 1 : i32
    %0 = arith.muli %arg0, %c1_i32 : i32
    %1 = arith.addi %0, %arg1 : i32
    %c0_i32 = arith.constant 0 : i32
    %c0_i32_0 = arith.constant 0 : i32
    return %1, %c0_i32 : i32, i32
  }
  func.func @transform_1(%arg0: i32, %arg1: i32) -> (i32, i32) {
    %c0_i32 = arith.constant 0 : i32
    %c0_i32_0 = arith.constant 0 : i32
    %c0_i32_1 = arith.constant 0 : i32
    return %c0_i32, %c0_i32_0 : i32, i32
  }
  func.func @transform_2(%arg0: i32, %arg1: i32) -> (i32, i32) {
    %c1_i32 = arith.constant 1 : i32
    %0 = arith.muli %arg0, %c1_i32 : i32
    %1 = arith.addi %0, %arg1 : i32
    %c0_i32 = arith.constant 0 : i32
    %c0_i32_0 = arith.constant 0 : i32
    return %1, %c0_i32 : i32, i32
  }
  func.func @transform_3(%arg0: i32, %arg1: i32) -> (i32, i32) {
    %c0_i32 = arith.constant 0 : i32
    %c0_i32_0 = arith.constant 0 : i32
    %c0_i32_1 = arith.constant 0 : i32
    return %c0_i32, %c0_i32_0 : i32, i32
  }
  func.func @transform_4(%arg0: i32, %arg1: i32) -> (i32, i32) {
    %c1_i32 = arith.constant 1 : i32
    %0 = arith.muli %arg0, %c1_i32 : i32
    %1 = arith.addi %0, %arg1 : i32
    %c0_i32 = arith.constant 0 : i32
    %c0_i32_0 = arith.constant 0 : i32
    return %1, %c0_i32 : i32, i32
  }
  func.func @transform_5(%arg0: i32, %arg1: i32) -> (i32, i32) {
    %c0_i32 = arith.constant 0 : i32
    %c0_i32_0 = arith.constant 0 : i32
    return %arg0, %c0_i32 : i32, i32
  }
  func.func @transform_6(%arg0: i32, %arg1: i32) -> (i32, i32) {
    %c0_i32 = arith.constant 0 : i32
    %c0_i32_0 = arith.constant 0 : i32
    return %arg0, %c0_i32 : i32, i32
  }
}

module attributes {stable_mosaic.version = 11 : i64} {
  func.func @_bf_match_kernel(%arg0: i32, %arg1: i32, %arg2: memref<64x128xf32, #tpu.memory_space<vmem>>, %arg3: memref<128x256xf32, #tpu.memory_space<vmem>>, %arg4: memref<64x1xf32, #tpu.memory_space<vmem>>, %arg5: memref<1x256xf32, #tpu.memory_space<vmem>>, %arg6: memref<64x1xi32, #tpu.memory_space<vmem>>, %arg7: memref<8x256xi32, #tpu.memory_space<vmem>>, %arg8: memref<8x256xf32, #tpu.memory_space<vmem>>) attributes {dimension_semantics = [#tpu.dimension_semantics<parallel>, #tpu.dimension_semantics<arbitrary>], iteration_bounds = array<i64: 1, 1>, scalar_prefetch = 0 : i64, scratch_operands = 0 : i64, tpu.core_type = #tpu.core_type<tc>, window_params = [{transform_indices = @transform_0, window_bounds = array<i64: 64, 128>}, {pipeline_mode = #tpu.pipeline_mode<synchronous>, transform_indices = @transform_1, window_bounds = array<i64: 128, 256>}, {transform_indices = @transform_2, window_bounds = array<i64: 64, 1>}, {pipeline_mode = #tpu.pipeline_mode<synchronous>, transform_indices = @transform_3, window_bounds = array<i64: 1, 256>}, {transform_indices = @transform_4, window_bounds = array<i64: 64, 1>}, {transform_indices = @transform_5, window_bounds = array<i64: 8, 256>}, {transform_indices = @transform_6, window_bounds = array<i64: 8, 256>}]} {
    %c0_i32 = arith.constant 0 : i32
    %0 = arith.cmpi eq, %arg1, %c0_i32 : i32
    %1 = arith.extui %0 : i1 to i32
    %c0_i32_0 = arith.constant 0 : i32
    %2 = arith.cmpi ne, %1, %c0_i32_0 : i32
    scf.if %2 {
      %cst_26 = arith.constant 0x7F800000 : f32
      %55 = vector.broadcast %cst_26 : f32 to vector<8x256xf32>
      %c0_27 = arith.constant 0 : index
      %c0_28 = arith.constant 0 : index
      %56 = vector.load %arg8[%c0_27, %c0_28] : memref<8x256xf32, #tpu.memory_space<vmem>>, vector<8x256xf32>
      tpu.vector_store %arg8[%c0_27, %c0_28], %55 {strides = array<i32>} : memref<8x256xf32, #tpu.memory_space<vmem>>, vector<8x256xf32>,
      %c0_i32_29 = arith.constant 0 : i32
      %57 = vector.broadcast %c0_i32_29 : i32 to vector<8x256xi32>
      %c0_30 = arith.constant 0 : index
      %c0_31 = arith.constant 0 : index
      %58 = vector.load %arg7[%c0_30, %c0_31] : memref<8x256xi32, #tpu.memory_space<vmem>>, vector<8x256xi32>
      tpu.vector_store %arg7[%c0_30, %c0_31], %57 {strides = array<i32>} : memref<8x256xi32, #tpu.memory_space<vmem>>, vector<8x256xi32>,
    } else {
    }
    %c0 = arith.constant 0 : index
    %c0_1 = arith.constant 0 : index
    %3 = vector.load %arg2[%c0, %c0_1] : memref<64x128xf32, #tpu.memory_space<vmem>>, vector<64x128xf32>
    %c0_2 = arith.constant 0 : index
    %c0_3 = arith.constant 0 : index
    %4 = vector.load %arg3[%c0_2, %c0_3] : memref<128x256xf32, #tpu.memory_space<vmem>>, vector<128x256xf32>
    %cst = arith.constant dense<0.000000e+00> : vector<64x256xf32>
    %5 = tpu.matmul %3, %4, %cst {dimension_numbers = #tpu.dot_dimension_numbers<[1], [0], [0], [1], [0, 0, 1, 1], [], []>} : vector<64x128xf32>, vector<128x256xf32>, vector<64x256xf32> -> vector<64x256xf32>
    %c0_4 = arith.constant 0 : index
    %c0_5 = arith.constant 0 : index
    %6 = vector.load %arg4[%c0_4, %c0_5] : memref<64x1xf32, #tpu.memory_space<vmem>>, vector<64x1xf32>
    %c0_6 = arith.constant 0 : index
    %c0_7 = arith.constant 0 : index
    %7 = vector.load %arg5[%c0_6, %c0_7] : memref<1x256xf32, #tpu.memory_space<vmem>>, vector<1x256xf32>
    %8 = vector.broadcast %6 : vector<64x1xf32> to vector<64x256xf32>
    %9 = vector.broadcast %7 : vector<1x256xf32> to vector<64x256xf32>
    %10 = arith.addf %8, %9 : vector<64x256xf32>
    %cst_8 = arith.constant 2.000000e+00 : f32
    %11 = vector.broadcast %cst_8 : f32 to vector<64x256xf32>
    %12 = arith.mulf %11, %5 : vector<64x256xf32>
    %13 = arith.subf %10, %12 : vector<64x256xf32>
    %14 = tpu.iota {dimensions = array<i32: 1>} : vector<1x256xi32>
    %c1_i32 = arith.constant 1 : i32
    %15 = arith.muli %arg0, %c1_i32 : i32
    %16 = arith.addi %15, %arg1 : i32
    %c64_i32 = arith.constant 64 : i32
    %17 = arith.muli %16, %c64_i32 : i32
    %18 = tpu.iota {dimensions = array<i32: 0>} : vector<64x1xi32>
    %19 = vector.broadcast %17 : i32 to vector<64x1xi32>
    %20 = arith.addi %18, %19 : vector<64x1xi32>
    %cst_9 = arith.constant dense<0x7F800000> : vector<64xf32>
    %21 = vector.multi_reduction <minimumf>, %13, %cst_9 [1] : vector<64x256xf32> to vector<64xf32>
    %22 = vector.shape_cast %21 : vector<64xf32> to vector<64x1xf32>
    %23 = vector.broadcast %22 : vector<64x1xf32> to vector<64x256xf32>
    %24 = arith.cmpf oeq, %13, %23 : vector<64x256xf32>
    %c256_i32 = arith.constant 256 : i32
    %25 = vector.shape_cast %14 : vector<1x256xi32> to vector<1x256xi32>
    %26 = vector.broadcast %25 : vector<1x256xi32> to vector<64x256xi32>
    %27 = vector.broadcast %c256_i32 : i32 to vector<64x256xi32>
    %28 = arith.select %24, %26, %27 : vector<64x256xi1>, vector<64x256xi32>
    %cst_10 = arith.constant dense<2147483647> : vector<64xi32>
    %29 = vector.multi_reduction <minsi>, %28, %cst_10 [1] : vector<64x256xi32> to vector<64xi32>
    %30 = vector.shape_cast %29 : vector<64xi32> to vector<64x1xi32>
    %c0_11 = arith.constant 0 : index
    %c0_12 = arith.constant 0 : index
    %31 = vector.load %arg6[%c0_11, %c0_12] : memref<64x1xi32, #tpu.memory_space<vmem>>, vector<64x1xi32>
    tpu.vector_store %arg6[%c0_11, %c0_12], %30 {strides = array<i32>} : memref<64x1xi32, #tpu.memory_space<vmem>>, vector<64x1xi32>,
    %cst_13 = arith.constant dense<0x7F800000> : vector<256xf32>
    %32 = vector.multi_reduction <minimumf>, %13, %cst_13 [0] : vector<64x256xf32> to vector<256xf32>
    %33 = vector.shape_cast %32 : vector<256xf32> to vector<1x256xf32>
    %34 = vector.broadcast %33 : vector<1x256xf32> to vector<64x256xf32>
    %35 = arith.cmpf oeq, %13, %34 : vector<64x256xf32>
    %c64_i32_14 = arith.constant 64 : i32
    %36 = vector.shape_cast %20 : vector<64x1xi32> to vector<64x1xi32>
    %37 = vector.broadcast %36 : vector<64x1xi32> to vector<64x256xi32>
    %38 = vector.broadcast %c64_i32_14 : i32 to vector<64x256xi32>
    %39 = arith.select %35, %37, %38 : vector<64x256xi1>, vector<64x256xi32>
    %cst_15 = arith.constant dense<2147483647> : vector<256xi32>
    %40 = vector.multi_reduction <minsi>, %39, %cst_15 [0] : vector<64x256xi32> to vector<256xi32>
    %41 = vector.shape_cast %40 : vector<256xi32> to vector<1x256xi32>
    %c0_16 = arith.constant 0 : index
    %c0_17 = arith.constant 0 : index
    %42 = vector.load %arg8[%c0_16, %c0_17] : memref<8x256xf32, #tpu.memory_space<vmem>>, vector<8x256xf32>
    %43 = vector.broadcast %33 : vector<1x256xf32> to vector<8x256xf32>
    %44 = arith.cmpf olt, %43, %42 : vector<8x256xf32>
    %c0_18 = arith.constant 0 : index
    %c0_19 = arith.constant 0 : index
    %45 = vector.load %arg8[%c0_18, %c0_19] : memref<8x256xf32, #tpu.memory_space<vmem>>, vector<8x256xf32>
    %46 = vector.shape_cast %33 : vector<1x256xf32> to vector<1x256xf32>
    %47 = vector.broadcast %46 : vector<1x256xf32> to vector<8x256xf32>
    %48 = arith.select %44, %47, %45 : vector<8x256xi1>, vector<8x256xf32>
    %c0_20 = arith.constant 0 : index
    %c0_21 = arith.constant 0 : index
    %49 = vector.load %arg8[%c0_20, %c0_21] : memref<8x256xf32, #tpu.memory_space<vmem>>, vector<8x256xf32>
    tpu.vector_store %arg8[%c0_20, %c0_21], %48 {strides = array<i32>} : memref<8x256xf32, #tpu.memory_space<vmem>>, vector<8x256xf32>,
    %c0_22 = arith.constant 0 : index
    %c0_23 = arith.constant 0 : index
    %50 = vector.load %arg7[%c0_22, %c0_23] : memref<8x256xi32, #tpu.memory_space<vmem>>, vector<8x256xi32>
    %51 = vector.shape_cast %41 : vector<1x256xi32> to vector<1x256xi32>
    %52 = vector.broadcast %51 : vector<1x256xi32> to vector<8x256xi32>
    %53 = arith.select %44, %52, %50 : vector<8x256xi1>, vector<8x256xi32>
    %c0_24 = arith.constant 0 : index
    %c0_25 = arith.constant 0 : index
    %54 = vector.load %arg7[%c0_24, %c0_25] : memref<8x256xi32, #tpu.memory_space<vmem>>, vector<8x256xi32>
    tpu.vector_store %arg7[%c0_24, %c0_25], %53 {strides = array<i32>} : memref<8x256xi32, #tpu.memory_space<vmem>>, vector<8x256xi32>,
    return
  }
  func.func @transform_0(%arg0: i32, %arg1: i32) -> (i32, i32) {
    %c1_i32 = arith.constant 1 : i32
    %0 = arith.muli %arg0, %c1_i32 : i32
    %1 = arith.addi %0, %arg1 : i32
    %c0_i32 = arith.constant 0 : i32
    %c0_i32_0 = arith.constant 0 : i32
    return %1, %c0_i32 : i32, i32
  }
  func.func @transform_1(%arg0: i32, %arg1: i32) -> (i32, i32) {
    %c0_i32 = arith.constant 0 : i32
    %c0_i32_0 = arith.constant 0 : i32
    %c0_i32_1 = arith.constant 0 : i32
    return %c0_i32, %c0_i32_0 : i32, i32
  }
  func.func @transform_2(%arg0: i32, %arg1: i32) -> (i32, i32) {
    %c1_i32 = arith.constant 1 : i32
    %0 = arith.muli %arg0, %c1_i32 : i32
    %1 = arith.addi %0, %arg1 : i32
    %c0_i32 = arith.constant 0 : i32
    %c0_i32_0 = arith.constant 0 : i32
    return %1, %c0_i32 : i32, i32
  }
  func.func @transform_3(%arg0: i32, %arg1: i32) -> (i32, i32) {
    %c0_i32 = arith.constant 0 : i32
    %c0_i32_0 = arith.constant 0 : i32
    %c0_i32_1 = arith.constant 0 : i32
    return %c0_i32, %c0_i32_0 : i32, i32
  }
  func.func @transform_4(%arg0: i32, %arg1: i32) -> (i32, i32) {
    %c1_i32 = arith.constant 1 : i32
    %0 = arith.muli %arg0, %c1_i32 : i32
    %1 = arith.addi %0, %arg1 : i32
    %c0_i32 = arith.constant 0 : i32
    %c0_i32_0 = arith.constant 0 : i32
    return %1, %c0_i32 : i32, i32
  }
  func.func @transform_5(%arg0: i32, %arg1: i32) -> (i32, i32) {
    %c0_i32 = arith.constant 0 : i32
    %c0_i32_0 = arith.constant 0 : i32
    return %arg0, %c0_i32 : i32, i32
  }
  func.func @transform_6(%arg0: i32, %arg1: i32) -> (i32, i32) {
    %c0_i32 = arith.constant 0 : i32
    %c0_i32_0 = arith.constant 0 : i32
    return %arg0, %c0_i32 : i32, i32
  }
}

</mosaic_0001>

<llo_original>
// kernel: tpu_custom_call.1
$region0: #{tpu_custom_call.1}
  #allocation0 [shape = 'u32[]', space=smem, size = 0x4, offset = 0x4, fixed_abs, tag = 'smem constant byte address 0x4 - core index']
  #allocation1 [shape = 'u32[144,128]{1,0:T(1,128)}', space=vmem, size = 0x12000, scoped, tag = 'internal scratch']
  %s0 = inlined_call_operand.vmem [shape: f32[64,128], index: 0, kind: input, shape index: {}]
  %s1 = inlined_call_operand.hbm [shape: f32[128,256], index: 1, kind: input, shape index: {}]
  %s2 = inlined_call_operand.vmem [shape: f32[64,1], index: 2, kind: input, shape index: {}]
  %s3 = inlined_call_operand.vmem [shape: f32[1,256], index: 3, kind: input, shape index: {}]
  %s4 = inlined_call_operand.vmem [shape: s32[64,1], index: 4, kind: output, shape index: {0}]
  %s5 = inlined_call_operand.hbm [shape: s32[8,256], index: 5, kind: output, shape index: {1}]
  %s6 = inlined_call_operand.hbm [shape: f32[8,256], index: 6, kind: output, shape index: {2}]
  %7 = xla_tuple %s4, %s5, %s6
  %s8 = sld [smem:[#allocation0]]
  $region50: #{tpu_custom_call.1} parent=0
    _
  %s10 = ssub.s32 1, %s8
  %s11 = scalar_select 0, %s10, %s8
  $region1: #{tpu_custom_call.1} parent=0
    #allocation2 [shape = 'u8[131072]{0}', space=vmem, size = 0x20000, scoped, tag = 'input window, operand 1, single buffered']
    #allocation3 [shape = 's32[1]{0}', space=sflag, size = 0x4, scoped, tag = 'scoped memory for tpu_custom_call.1']
    #allocation4 [shape = 's32[1]{0}', space=sflag, size = 0x4, scoped, tag = 'scoped memory for tpu_custom_call.1']
    #allocation5 [shape = 'u8[8192]{0}', space=vmem, size = 0x2000, scoped, tag = 'output window, operand 1, single buffered']
    #allocation6 [shape = 'u8[8192]{0}', space=vmem, size = 0x2000, scoped, tag = 'output window, operand 2, single buffered']
    #allocation7 [shape = 's32[1]{0}', space=sflag, size = 0x4, scoped, tag = 'scoped memory for tpu_custom_call.1']
    %12 = vsyncpa [#allocation3], 0
    %13 = vsyncpa [#allocation4], 0
    %14 = vsyncpa [#allocation7], 0
    // Predicated region
    $region2: #{tpu_custom_call.1} parent=1 // pred_check
      _
    $region3: #{tpu_custom_call.1} parent=1 // pred_check_branch
      %16 = sbr.rel (0) target = $region5
    $region4: #{tpu_custom_call.1} parent=1 // pred_region
      %s17 = sadd.s32 0, 0
      %s18 = smul.u32 8, %s17
      %p19 = scmp.lt.s32.totalorder %s18, 7
      %s20 = scalar_select %p19, %s18, 7
      %s21 = smul.addr %s20, 8
      %s22 = scalar_lea.vmem %s0, %s21
      %s23 = sadd.s32 0, 0
      %s24 = smul.u32 8, %s23
    $region5: #{tpu_custom_call.1} parent=1 // pred_fallthru
      _
    // Predicated region
    $region6: #{tpu_custom_call.1} parent=1 // pred_check
      _
    $region7: #{tpu_custom_call.1} parent=1 // pred_check_branch
      %26 = sbr.rel (0) target = $region9
    $region8: #{tpu_custom_call.1} parent=1 // pred_region
      %s28 = ssub.s32 4096, 4096
      %29 = vsyncadd [#allocation3], %s28
      %s30 = sshll.u32 [#allocation2], 4
      %s31 = int_to_ptr.vmem [resolvable:$true] %s30
      %36 = dma.hbm_to_vmem [thread:$0]  %s1, 4096, %s31, [#allocation3], 256, 256, 16
    $region9: #{tpu_custom_call.1} parent=1 // pred_fallthru
      _
    // Predicated region
    $region10: #{tpu_custom_call.1} parent=1 // pred_check
      _
    $region11: #{tpu_custom_call.1} parent=1 // pred_check_branch
      %38 = sbr.rel (0) target = $region13
    $region12: #{tpu_custom_call.1} parent=1 // pred_region
      %s39 = sadd.s32 0, 0
      %s40 = smul.u32 8, %s39
      %p41 = scmp.lt.s32.totalorder %s40, 7
      %s42 = scalar_select %p41, %s40, 7
      %s43 = smul.addr %s42, 8
      %s44 = scalar_lea.vmem %s2, %s43
      %s45 = sadd.s32 0, 0
      %s46 = smul.u32 8, %s45
    $region13: #{tpu_custom_call.1} parent=1 // pred_fallthru
      _
    // Predicated region
    $region14: #{tpu_custom_call.1} parent=1 // pred_check
      _
    $region15: #{tpu_custom_call.1} parent=1 // pred_check_branch
      %48 = sbr.rel (0) target = $region17
    $region16: #{tpu_custom_call.1} parent=1 // pred_region
      _
    $region17: #{tpu_custom_call.1} parent=1 // pred_fallthru
      _
    // Predicated region
    $region18: #{tpu_custom_call.1} parent=1 // pred_check
      _
    $region19: #{tpu_custom_call.1} parent=1 // pred_check_branch
      %50 = sbr.rel (0) target = $region21
    $region20: #{tpu_custom_call.1} parent=1 // pred_region
      %51 = dma.done [#allocation3], 4096
    $region21: #{tpu_custom_call.1} parent=1 // pred_fallthru
      _
    %s52 = sadd.s32 0, 0
    %s53 = smul.u32 8, %s52
    %p54 = scmp.lt.s32.totalorder %s53, 7
    %s55 = scalar_select %p54, %s53, 7
    %s56 = smul.addr %s55, 8
    %s57 = scalar_lea.vmem %s0, %s56
    %s58 = sadd.s32 0, 0
    %s59 = smul.u32 8, %s58
    %p60 = scmp.lt.s32.totalorder %s59, 7
    %s61 = scalar_select %p60, %s59, 7
    %s62 = smul.addr %s61, 8
    %s63 = scalar_lea.vmem %s2, %s62
    %s64 = sadd.s32 0, 0
    %s65 = smul.u32 8, %s64
    %p66 = scmp.lt.s32.totalorder %s65, 7
    %s67 = scalar_select %p66, %s65, 7
    %s68 = smul.addr %s67, 8
    %s69 = scalar_lea.vmem %s4, %s68
    %s70 = sadd.s32 0, 0
    %s71 = smul.u32 8, %s70
    %p72 = scmp.lt.s32.totalorder %s71, 7
    %s73 = scalar_select %p72, %s71, 7
    %s74 = smul.addr %s73, 8
    %s75 = scalar_lea.vmem %s0, %s74
    %s76 = sadd.s32 0, 0
    %s77 = smul.u32 8, %s76
    %s78 = sadd.s32 0, 0
    %s79 = smul.u32 8, %s78
    %p80 = scmp.lt.s32.totalorder %s79, 7
    %s81 = scalar_select %p80, %s79, 7
    %s82 = smul.addr %s81, 8
    %s83 = scalar_lea.vmem %s2, %s82
    %s84 = sadd.s32 0, 0
    %s85 = smul.u32 8, %s84
    %s86 = sadd.s32 0, 0
    %s87 = smul.u32 8, %s86
    %p88 = scmp.lt.s32.totalorder %s87, 7
    %s89 = scalar_select %p88, %s87, 7
    %s90 = smul.addr %s89, 8
    %s91 = scalar_lea.vmem %s4, %s90
    %s92 = sadd.s32 0, 0
    %s93 = smul.u32 8, %s92
    %p94 = scmp.eq.s32.totalorder 0, 0
    // Predicated region
    $region22: #{tpu_custom_call.1} parent=1 // pred_check
      %p95 = pneg %p94
    $region23: #{tpu_custom_call.1} parent=1 // pred_check_branch
      %97 = sbr.rel (%p95) target = $region25
    $region24: #{tpu_custom_call.1} parent=1 // pred_region
      %98 = vst [vmem:[#allocation6] sm:$0xff] inf
      %99 = vst [vmem:[#allocation6 + $0x8] sm:$0xff] inf
      %100 = vst [vmem:[#allocation5] sm:$0xff] 0
      %101 = vst [vmem:[#allocation5 + $0x8] sm:$0xff] 0
    $region25: #{tpu_custom_call.1} parent=1 // pred_fallthru
      _
    %v102 = vld [vmem:[%s75] sm:$0xff]
    %v103 = vld [vmem:[%s75 + $0x8] sm:$0xff]
    %v104 = vld [vmem:[%s75 + $0x10] sm:$0xff]
    %v105 = vld [vmem:[%s75 + $0x18] sm:$0xff]
    %v106 = vld [vmem:[%s75 + $0x20] sm:$0xff]
    %v107 = vld [vmem:[%s75 + $0x28] sm:$0xff]
    %v108 = vld [vmem:[%s75 + $0x30] sm:$0xff]
    %v109 = vld [vmem:[%s75 + $0x38] sm:$0xff]
    %v110 = vld [vmem:[#allocation2] sm:$0xff]
    %v111 = vld [vmem:[#allocation2 + $0x8] sm:$0xff]
    %v112 = vld [vmem:[#allocation2 + $0x10] sm:$0xff]
    %v113 = vld [vmem:[#allocation2 + $0x18] sm:$0xff]
    %v114 = vld [vmem:[#allocation2 + $0x20] sm:$0xff]
    %v115 = vld [vmem:[#allocation2 + $0x28] sm:$0xff]
    %v116 = vld [vmem:[#allocation2 + $0x30] sm:$0xff]
    %v117 = vld [vmem:[#allocation2 + $0x38] sm:$0xff]
    %v118 = vld [vmem:[#allocation2 + $0x40] sm:$0xff]
    %v119 = vld [vmem:[#allocation2 + $0x48] sm:$0xff]
    %v120 = vld [vmem:[#allocation2 + $0x50] sm:$0xff]
    %v121 = vld [vmem:[#allocation2 + $0x58] sm:$0xff]
    %v122 = vld [vmem:[#allocation2 + $0x60] sm:$0xff]
    %v123 = vld [vmem:[#allocation2 + $0x68] sm:$0xff]
    %v124 = vld [vmem:[#allocation2 + $0x70] sm:$0xff]
    %v125 = vld [vmem:[#allocation2 + $0x78] sm:$0xff]
    %v126 = vld [vmem:[#allocation2 + $0x80] sm:$0xff]
    %v127 = vld [vmem:[#allocation2 + $0x88] sm:$0xff]
    %v128 = vld [vmem:[#allocation2 + $0x90] sm:$0xff]
    %v129 = vld [vmem:[#allocation2 + $0x98] sm:$0xff]
    %v130 = vld [vmem:[#allocation2 + $0xa0] sm:$0xff]
    %v131 = vld [vmem:[#allocation2 + $0xa8] sm:$0xff]
    %v132 = vld [vmem:[#allocation2 + $0xb0] sm:$0xff]
    %v133 = vld [vmem:[#allocation2 + $0xb8] sm:$0xff]
    %v134 = vld [vmem:[#allocation2 + $0xc0] sm:$0xff]
    %v135 = vld [vmem:[#allocation2 + $0xc8] sm:$0xff]
    %v136 = vld [vmem:[#allocation2 + $0xd0] sm:$0xff]
    %v137 = vld [vmem:[#allocation2 + $0xd8] sm:$0xff]
    %v138 = vld [vmem:[#allocation2 + $0xe0] sm:$0xff]
    %v139 = vld [vmem:[#allocation2 + $0xe8] sm:$0xff]
    %v140 = vld [vmem:[#allocation2 + $0xf0] sm:$0xff]
    %v141 = vld [vmem:[#allocation2 + $0xf8] sm:$0xff]
    %142 = vmatprep.subr.mxu0 %v141
    %143 = vmatpush1.msra.mxu0 %v140
    %144 = vmatprep.subr.mxu0 %v139
    %145 = vmatpush1.msra.mxu0 %v138
    %146 = vmatprep.subr.mxu0 %v137
    %147 = vmatpush1.msra.mxu0 %v136
    %148 = vmatprep.subr.mxu0 %v135
    %149 = vmatpush1.msra.mxu0 %v134
    %150 = vmatprep.subr.mxu0 %v133
    %151 = vmatpush1.msra.mxu0 %v132
    %152 = vmatprep.subr.mxu0 %v131
    %153 = vmatpush1.msra.mxu0 %v130
    %154 = vmatprep.subr.mxu0 %v129
    %155 = vmatpush1.msra.mxu0 %v128
    %156 = vmatprep.subr.mxu0 %v127
    %157 = vmatpush1.msra.mxu0 %v126
    %158 = vmatprep.subr.mxu0 %v125
    %159 = vmatpush1.msra.mxu0 %v124
    %160 = vmatprep.subr.mxu0 %v123
    %161 = vmatpush1.msra.mxu0 %v122
    %162 = vmatprep.subr.mxu0 %v121
    %163 = vmatpush1.msra.mxu0 %v120
    %164 = vmatprep.subr.mxu0 %v119
    %165 = vmatpush1.msra.mxu0 %v118
    %166 = vmatprep.subr.mxu0 %v117
    %167 = vmatpush1.msra.mxu0 %v116
    %168 = vmatprep.subr.mxu0 %v115
    %169 = vmatpush1.msra.mxu0 %v114
    %170 = vmatprep.subr.mxu0 %v113
    %171 = vmatpush1.msra.mxu0 %v112
    %172 = vmatprep.subr.mxu0 %v111
    %173 = vmatpush1.msra.mxu0 %v110
    %174 = vmatprep.subr.mxu0 0.0
    %175 = vmatpush2.msra.mxu0 0.0
    %176 = vmatprep.subr.mxu0 0.0
    %177 = vmatpush2.msra.mxu0 0.0
    %178 = vmatprep.subr.mxu0 0.0
    %179 = vmatpush2.msra.mxu0 0.0
    %180 = vmatprep.subr.mxu0 0.0
    %181 = vmatpush2.msra.mxu0 0.0
    %182 = vmatprep.subr.mxu0 0.0
    %183 = vmatpush2.msra.mxu0 0.0
    %184 = vmatprep.subr.mxu0 0.0
    %185 = vmatpush2.msra.mxu0 0.0
    %186 = vmatprep.subr.mxu0 0.0
    %187 = vmatpush2.msra.mxu0 0.0
    %188 = vmatprep.subr.mxu0 0.0
    %189 = vmatpush2.msra.mxu0 0.0
    %190 = vmatprep.subr.mxu0 0.0
    %191 = vmatpush2.msra.mxu0 0.0
    %192 = vmatprep.subr.mxu0 0.0
    %193 = vmatpush2.msra.mxu0 0.0
    %194 = vmatprep.subr.mxu0 0.0
    %195 = vmatpush2.msra.mxu0 0.0
    %196 = vmatprep.subr.mxu0 0.0
    %197 = vmatpush2.msra.mxu0 0.0
    %198 = vmatprep.subr.mxu0 0.0
    %199 = vmatpush2.msra.mxu0 0.0
    %200 = vmatprep.subr.mxu0 0.0
    %201 = vmatpush2.msra.mxu0 0.0
    %202 = vmatprep.subr.mxu0 0.0
    %203 = vmatpush2.msra.mxu0 0.0
    %204 = vmatprep.subr.mxu0 0.0
    %205 = vmatpush2.msra.mxu0 0.0
    %206 = vmatprep.mubr.f32.mxu0 0.0
    %207 = vmatmul.mubr.f32.gmra.mxu0 %v102
    %v208 = vpop.f32.mrf.mxu0
    %v209 = vadd.f32 0.0, %v208
    %v210 = vpop.f32.mrf.mxu0
    %v211 = vadd.f32 0.0, %v210
    %212 = vmatprep.mubr.f32.mxu0 0.0
    %213 = vmatmul.mubr.f32.gmra.mxu0 %v103
    %v214 = vpop.f32.mrf.mxu0
    %v215 = vadd.f32 0.0, %v214
    %v216 = vpop.f32.mrf.mxu0
    %v217 = vadd.f32 0.0, %v216
    %218 = vmatprep.mubr.f32.mxu0 0.0
    %219 = vmatmul.mubr.f32.gmra.mxu0 %v104
    %v220 = vpop.f32.mrf.mxu0
    %v221 = vadd.f32 0.0, %v220
    %v222 = vpop.f32.mrf.mxu0
    %v223 = vadd.f32 0.0, %v222
    %224 = vmatprep.mubr.f32.mxu0 0.0
    %225 = vmatmul.mubr.f32.gmra.mxu0 %v105
    %v226 = vpop.f32.mrf.mxu0
    %v227 = vadd.f32 0.0, %v226
    %v228 = vpop.f32.mrf.mxu0
    %v229 = vadd.f32 0.0, %v228
    %230 = vmatprep.mubr.f32.mxu0 0.0
    %231 = vmatmul.mubr.f32.gmra.mxu0 %v106
    %v232 = vpop.f32.mrf.mxu0
    %v233 = vadd.f32 0.0, %v232
    %v234 = vpop.f32.mrf.mxu0
    %v235 = vadd.f32 0.0, %v234
    %236 = vmatprep.mubr.f32.mxu0 0.0
    %237 = vmatmul.mubr.f32.gmra.mxu0 %v107
    %v238 = vpop.f32.mrf.mxu0
    %v239 = vadd.f32 0.0, %v238
    %v240 = vpop.f32.mrf.mxu0
    %v241 = vadd.f32 0.0, %v240
    %242 = vmatprep.mubr.f32.mxu0 0.0
    %243 = vmatmul.mubr.f32.gmra.mxu0 %v108
    %v244 = vpop.f32.mrf.mxu0
    %v245 = vadd.f32 0.0, %v244
    %v246 = vpop.f32.mrf.mxu0
    %v247 = vadd.f32 0.0, %v246
    %248 = vmatprep.mubr.f32.mxu0 0.0
    %249 = vmatmul.mubr.f32.gmra.mxu0 %v109
    %v250 = vpop.f32.mrf.mxu0
    %v251 = vadd.f32 0.0, %v250
    %v252 = vpop.f32.mrf.mxu0
    %v253 = vadd.f32 0.0, %v252
    %254 = vdwg.mxu0
    %v255 = vld [vmem:[%s83] sm:$0xff]
    %v256 = vld [vmem:[%s83 + $0x8] sm:$0xff]
    %v257 = vld [vmem:[%s83 + $0x10] sm:$0xff]
    %v258 = vld [vmem:[%s83 + $0x18] sm:$0xff]
    %v259 = vld [vmem:[%s83 + $0x20] sm:$0xff]
    %v260 = vld [vmem:[%s83 + $0x28] sm:$0xff]
    %v261 = vld [vmem:[%s83 + $0x30] sm:$0xff]
    %v262 = vld [vmem:[%s83 + $0x38] sm:$0xff]
    %v263 = vld [vmem:[%s3] sm:$0x3]
    %265 = vset.pattern.permute.xlu0 0
    %266 = vperm.xlu0 %265, %v255
    %v267 = vpop.permute.xlu0 %266
    %270 = vset.pattern.permute.xlu0 0
    %271 = vperm.xlu0 %270, %v256
    %v272 = vpop.permute.xlu0 %271
    %275 = vset.pattern.permute.xlu0 0
    %276 = vperm.xlu0 %275, %v257
    %v277 = vpop.permute.xlu0 %276
    %280 = vset.pattern.permute.xlu0 0
    %281 = vperm.xlu0 %280, %v258
    %v282 = vpop.permute.xlu0 %281
    %285 = vset.pattern.permute.xlu0 0
    %286 = vperm.xlu0 %285, %v259
    %v287 = vpop.permute.xlu0 %286
    %290 = vset.pattern.permute.xlu0 0
    %291 = vperm.xlu0 %290, %v260
    %v292 = vpop.permute.xlu0 %291
    %295 = vset.pattern.permute.xlu0 0
    %296 = vperm.xlu0 %295, %v261
    %v297 = vpop.permute.xlu0 %296
    %300 = vset.pattern.permute.xlu0 0
    %301 = vperm.xlu0 %300, %v262
    %v302 = vpop.permute.xlu0 %301
    %v305 = vlaneseq
    %v306 = vshrl.u32 %v305, 7
    %v307 = vsub.s32 0, %v306
    %v308 = vrot.slane %v263, %v307
    %v309 = vlaneseq
    %v310 = vshrl.u32 %v309, 7
    %v311 = vsub.s32 1, %v310
    %v312 = vrot.slane %v263, %v311
    %v315 = vadd.f32 %v267, %v308
    %v316 = vadd.f32 %v267, %v312
    %v317 = vadd.f32 %v272, %v308
    %v318 = vadd.f32 %v272, %v312
    %v319 = vadd.f32 %v277, %v308
    %v320 = vadd.f32 %v277, %v312
    %v321 = vadd.f32 %v282, %v308
    %v322 = vadd.f32 %v282, %v312
    %v323 = vadd.f32 %v287, %v308
    %v324 = vadd.f32 %v287, %v312
    %v325 = vadd.f32 %v292, %v308
    %v326 = vadd.f32 %v292, %v312
    %v327 = vadd.f32 %v297, %v308
    %v328 = vadd.f32 %v297, %v312
    %v329 = vadd.f32 %v302, %v308
    %v330 = vadd.f32 %v302, %v312
    %v331 = vmul.f32 %v209, 2.0
    %v332 = vmul.f32 %v211, 2.0
    %v333 = vmul.f32 %v215, 2.0
    %v334 = vmul.f32 %v217, 2.0
    %v335 = vmul.f32 %v221, 2.0
    %v336 = vmul.f32 %v223, 2.0
    %v337 = vmul.f32 %v227, 2.0
    %v338 = vmul.f32 %v229, 2.0
    %v339 = vmul.f32 %v233, 2.0
    %v340 = vmul.f32 %v235, 2.0
    %v341 = vmul.f32 %v239, 2.0
    %v342 = vmul.f32 %v241, 2.0
    %v343 = vmul.f32 %v245, 2.0
    %v344 = vmul.f32 %v247, 2.0
    %v345 = vmul.f32 %v251, 2.0
    %v346 = vmul.f32 %v253, 2.0
    %v347 = vsub.f32 %v315, %v331
    %v348 = vsub.f32 %v316, %v332
    %v349 = vsub.f32 %v317, %v333
    %v350 = vsub.f32 %v318, %v334
    %v351 = vsub.f32 %v319, %v335
    %v352 = vsub.f32 %v320, %v336
    %v353 = vsub.f32 %v321, %v337
    %v354 = vsub.f32 %v322, %v338
    %v355 = vsub.f32 %v323, %v339
    %v356 = vsub.f32 %v324, %v340
    %v357 = vsub.f32 %v325, %v341
    %v358 = vsub.f32 %v326, %v342
    %v359 = vsub.f32 %v327, %v343
    %v360 = vsub.f32 %v328, %v344
    %v361 = vsub.f32 %v329, %v345
    %v362 = vsub.f32 %v330, %v346
    %v363 = vlaneseq
    %v364 = vand.u32 %v363, 127
    %v365 = vadd.s32 %v364, 128
    %s366 = sadd.s32 0, 0
    %s367 = smul.u32 %s366, 64
    %v368 = vlaneseq
    %v369 = vshrl.u32 %v368, 7
    %v370 = vadd.s32 %v369, 8
    %v371 = vadd.s32 %v369, 16
    %v372 = vadd.s32 %v369, 24
    %v373 = vadd.s32 %v369, 32
    %v374 = vadd.s32 %v369, 40
    %v375 = vadd.s32 %v369, 48
    %v376 = vadd.s32 %v369, 56
    %v377 = vstv %s367
    %v378 = vadd.s32 %v369, %v377
    %v379 = vadd.s32 %v370, %v377
    %v380 = vadd.s32 %v371, %v377
    %v381 = vadd.s32 %v372, %v377
    %v382 = vadd.s32 %v373, %v377
    %v383 = vadd.s32 %v374, %v377
    %v384 = vadd.s32 %v375, %v377
    %v385 = vadd.s32 %v376, %v377
    %v386 = vmin.f32 %v347, %v348
    %387 = vmin.xlane.f32.xlu0 %v386
    %v388 = vpop.xlane.xlu0 %387
    %v389 = vmin.f32 %v349, %v350
    %390 = vmin.xlane.f32.xlu0 %v389
    %v391 = vpop.xlane.xlu0 %390
    %v392 = vmin.f32 %v351, %v352
    %393 = vmin.xlane.f32.xlu0 %v392
    %v394 = vpop.xlane.xlu0 %393
    %v395 = vmin.f32 %v353, %v354
    %396 = vmin.xlane.f32.xlu0 %v395
    %v397 = vpop.xlane.xlu0 %396
    %v398 = vmin.f32 %v355, %v356
    %399 = vmin.xlane.f32.xlu0 %v398
    %v400 = vpop.xlane.xlu0 %399
    %v401 = vmin.f32 %v357, %v358
    %402 = vmin.xlane.f32.xlu0 %v401
    %v403 = vpop.xlane.xlu0 %402
    %v404 = vmin.f32 %v359, %v360
    %405 = vmin.xlane.f32.xlu0 %v404
    %v406 = vpop.xlane.xlu0 %405
    %v407 = vmin.f32 %v361, %v362
    %408 = vmin.xlane.f32.xlu0 %v407
    %v409 = vpop.xlane.xlu0 %408
    %vm410 = vcmp.eq.f32.partialorder %v347, %v388
    %vm411 = vcmp.eq.f32.partialorder %v348, %v388
    %vm412 = vcmp.eq.f32.partialorder %v349, %v391
    %vm413 = vcmp.eq.f32.partialorder %v350, %v391
    %vm414 = vcmp.eq.f32.partialorder %v351, %v394
    %vm415 = vcmp.eq.f32.partialorder %v352, %v394
    %vm416 = vcmp.eq.f32.partialorder %v353, %v397
    %vm417 = vcmp.eq.f32.partialorder %v354, %v397
    %vm418 = vcmp.eq.f32.partialorder %v355, %v400
    %vm419 = vcmp.eq.f32.partialorder %v356, %v400
    %vm420 = vcmp.eq.f32.partialorder %v357, %v403
    %vm421 = vcmp.eq.f32.partialorder %v358, %v403
    %vm422 = vcmp.eq.f32.partialorder %v359, %v406
    %vm423 = vcmp.eq.f32.partialorder %v360, %v406
    %vm424 = vcmp.eq.f32.partialorder %v361, %v409
    %vm425 = vcmp.eq.f32.partialorder %v362, %v409
    %v426 = vsel %vm410, %v364, 256
    %v427 = vsel %vm411, %v365, 256
    %v428 = vsel %vm412, %v364, 256
    %v429 = vsel %vm413, %v365, 256
    %v430 = vsel %vm414, %v364, 256
    %v431 = vsel %vm415, %v365, 256
    %v432 = vsel %vm416, %v364, 256
    %v433 = vsel %vm417, %v365, 256
    %v434 = vsel %vm418, %v364, 256
    %v435 = vsel %vm419, %v365, 256
    %v436 = vsel %vm420, %v364, 256
    %v437 = vsel %vm421, %v365, 256
    %v438 = vsel %vm422, %v364, 256
    %v439 = vsel %vm423, %v365, 256
    %v440 = vsel %vm424, %v364, 256
    %v441 = vsel %vm425, %v365, 256
    %vm442 = vcmp.lt.s32.totalorder %v426, %v427
    %v443 = vsel %vm442, %v426, %v427
    %v444 = vand.u32 %v443, 65535
    %v445 = vshra.s32 %v443, 16
    %v446 = vcvt.s32.f32 %v444
    %v447 = vcvt.s32.f32 %v445
    %448 = vmin.xlane.f32.xlu0 %v447
    %v449 = vpop.xlane.xlu0 %448
    %vm450 = vcmp.eq.f32.partialorder %v447, %v449
    %v451 = vsel %vm450, %v446, inf
    %452 = vmin.xlane.f32.xlu0 %v451
    %v453 = vpop.xlane.xlu0 %452
    %v454 = vcvt.f32.s32 %v453
    %v455 = vcvt.f32.s32 %v449
    %v456 = vshll.u32 %v455, 16
    %v457 = vadd.s32 %v456, %v454
    %vm458 = vcmp.lt.s32.totalorder %v428, %v429
    %v459 = vsel %vm458, %v428, %v429
    %v460 = vand.u32 %v459, 65535
    %v461 = vshra.s32 %v459, 16
    %v462 = vcvt.s32.f32 %v460
    %v463 = vcvt.s32.f32 %v461
    %464 = vmin.xlane.f32.xlu0 %v463
    %v465 = vpop.xlane.xlu0 %464
    %vm466 = vcmp.eq.f32.partialorder %v463, %v465
    %v467 = vsel %vm466, %v462, inf
    %468 = vmin.xlane.f32.xlu0 %v467
    %v469 = vpop.xlane.xlu0 %468
    %v470 = vcvt.f32.s32 %v469
    %v471 = vcvt.f32.s32 %v465
    %v472 = vshll.u32 %v471, 16
    %v473 = vadd.s32 %v472, %v470
    %vm474 = vcmp.lt.s32.totalorder %v430, %v431
    %v475 = vsel %vm474, %v430, %v431
    %v476 = vand.u32 %v475, 65535
    %v477 = vshra.s32 %v475, 16
    %v478 = vcvt.s32.f32 %v476
    %v479 = vcvt.s32.f32 %v477
    %480 = vmin.xlane.f32.xlu0 %v479
    %v481 = vpop.xlane.xlu0 %480
    %vm482 = vcmp.eq.f32.partialorder %v479, %v481
    %v483 = vsel %vm482, %v478, inf
    %484 = vmin.xlane.f32.xlu0 %v483
    %v485 = vpop.xlane.xlu0 %484
    %v486 = vcvt.f32.s32 %v485
    %v487 = vcvt.f32.s32 %v481
    %v488 = vshll.u32 %v487, 16
    %v489 = vadd.s32 %v488, %v486
    %vm490 = vcmp.lt.s32.totalorder %v432, %v433
    %v491 = vsel %vm490, %v432, %v433
    %v492 = vand.u32 %v491, 65535
    %v493 = vshra.s32 %v491, 16
    %v494 = vcvt.s32.f32 %v492
    %v495 = vcvt.s32.f32 %v493
    %496 = vmin.xlane.f32.xlu0 %v495
    %v497 = vpop.xlane.xlu0 %496
    %vm498 = vcmp.eq.f32.partialorder %v495, %v497
    %v499 = vsel %vm498, %v494, inf
    %500 = vmin.xlane.f32.xlu0 %v499
    %v501 = vpop.xlane.xlu0 %500
    %v502 = vcvt.f32.s32 %v501
    %v503 = vcvt.f32.s32 %v497
    %v504 = vshll.u32 %v503, 16
    %v505 = vadd.s32 %v504, %v502
    %vm506 = vcmp.lt.s32.totalorder %v434, %v435
    %v507 = vsel %vm506, %v434, %v435
    %v508 = vand.u32 %v507, 65535
    %v509 = vshra.s32 %v507, 16
    %v510 = vcvt.s32.f32 %v508
    %v511 = vcvt.s32.f32 %v509
    %512 = vmin.xlane.f32.xlu0 %v511
    %v513 = vpop.xlane.xlu0 %512
    %vm514 = vcmp.eq.f32.partialorder %v511, %v513
    %v515 = vsel %vm514, %v510, inf
    %516 = vmin.xlane.f32.xlu0 %v515
    %v517 = vpop.xlane.xlu0 %516
    %v518 = vcvt.f32.s32 %v517
    %v519 = vcvt.f32.s32 %v513
    %v520 = vshll.u32 %v519, 16
    %v521 = vadd.s32 %v520, %v518
    %vm522 = vcmp.lt.s32.totalorder %v436, %v437
    %v523 = vsel %vm522, %v436, %v437
    %v524 = vand.u32 %v523, 65535
    %v525 = vshra.s32 %v523, 16
    %v526 = vcvt.s32.f32 %v524
    %v527 = vcvt.s32.f32 %v525
    %528 = vmin.xlane.f32.xlu0 %v527
    %v529 = vpop.xlane.xlu0 %528
    %vm530 = vcmp.eq.f32.partialorder %v527, %v529
    %v531 = vsel %vm530, %v526, inf
    %532 = vmin.xlane.f32.xlu0 %v531
    %v533 = vpop.xlane.xlu0 %532
    %v534 = vcvt.f32.s32 %v533
    %v535 = vcvt.f32.s32 %v529
    %v536 = vshll.u32 %v535, 16
    %v537 = vadd.s32 %v536, %v534
    %vm538 = vcmp.lt.s32.totalorder %v438, %v439
    %v539 = vsel %vm538, %v438, %v439
    %v540 = vand.u32 %v539, 65535
    %v541 = vshra.s32 %v539, 16
    %v542 = vcvt.s32.f32 %v540
    %v543 = vcvt.s32.f32 %v541
    %544 = vmin.xlane.f32.xlu0 %v543
    %v545 = vpop.xlane.xlu0 %544
    %vm546 = vcmp.eq.f32.partialorder %v543, %v545
    %v547 = vsel %vm546, %v542, inf
    %548 = vmin.xlane.f32.xlu0 %v547
    %v549 = vpop.xlane.xlu0 %548
    %v550 = vcvt.f32.s32 %v549
    %v551 = vcvt.f32.s32 %v545
    %v552 = vshll.u32 %v551, 16
    %v553 = vadd.s32 %v552, %v550
    %vm554 = vcmp.lt.s32.totalorder %v440, %v441
    %v555 = vsel %vm554, %v440, %v441
    %v556 = vand.u32 %v555, 65535
    %v557 = vshra.s32 %v555, 16
    %v558 = vcvt.s32.f32 %v556
    %v559 = vcvt.s32.f32 %v557
    %560 = vmin.xlane.f32.xlu0 %v559
    %v561 = vpop.xlane.xlu0 %560
    %vm562 = vcmp.eq.f32.partialorder %v559, %v561
    %v563 = vsel %vm562, %v558, inf
    %564 = vmin.xlane.f32.xlu0 %v563
    %v565 = vpop.xlane.xlu0 %564
    %v566 = vcvt.f32.s32 %v565
    %v567 = vcvt.f32.s32 %v561
    %v568 = vshll.u32 %v567, 16
    %v569 = vadd.s32 %v568, %v566
    %vm570 = vcmask 7168
    %571 = vst.msk [vmem:[%s91] sm:$0xff] %vm570, %v457
    %572 = vst.msk [vmem:[%s91 + $0x8] sm:$0xff] %vm570, %v473
    %573 = vst.msk [vmem:[%s91 + $0x10] sm:$0xff] %vm570, %v489
    %574 = vst.msk [vmem:[%s91 + $0x18] sm:$0xff] %vm570, %v505
    %575 = vst.msk [vmem:[%s91 + $0x20] sm:$0xff] %vm570, %v521
    %576 = vst.msk [vmem:[%s91 + $0x28] sm:$0xff] %vm570, %v537
    %577 = vst.msk [vmem:[%s91 + $0x30] sm:$0xff] %vm570, %v553
    %578 = vst.msk [vmem:[%s91 + $0x38] sm:$0xff] %vm570, %v569
    %v579 = vmin.f32 %v347, %v351
    %v580 = vmin.f32 %v349, %v353
    %v581 = vmin.f32 %v579, %v355
    %v582 = vmin.f32 %v580, %v357
    %v583 = vmin.f32 %v581, %v359
    %v584 = vmin.f32 %v582, %v361
    %v585 = vmin.f32 %v583, %v584
    %v586 = vrot.slane %v585, 4
    %v587 = vmin.f32 %v585, %v586
    %v588 = vrot.slane %v587, 2
    %v589 = vmin.f32 %v587, %v588
    %v590 = vrot.slane %v589, 1
    %v591 = vmin.f32 %v589, %v590
    %v592 = vmin.f32 %v348, %v352
    %v593 = vmin.f32 %v350, %v354
    %v594 = vmin.f32 %v592, %v356
    %v595 = vmin.f32 %v593, %v358
    %v596 = vmin.f32 %v594, %v360
    %v597 = vmin.f32 %v595, %v362
    %v598 = vmin.f32 %v596, %v597
    %v599 = vrot.slane %v598, 4
    %v600 = vmin.f32 %v598, %v599
    %v601 = vrot.slane %v600, 2
    %v602 = vmin.f32 %v600, %v601
    %v603 = vrot.slane %v602, 1
    %v604 = vmin.f32 %v602, %v603
    %vm605 = vcmp.eq.f32.partialorder %v347, %v591
    %vm606 = vcmp.eq.f32.partialorder %v348, %v604
    %vm607 = vcmp.eq.f32.partialorder %v349, %v591
    %vm608 = vcmp.eq.f32.partialorder %v350, %v604
    %vm609 = vcmp.eq.f32.partialorder %v351, %v591
    %vm610 = vcmp.eq.f32.partialorder %v352, %v604
    %vm611 = vcmp.eq.f32.partialorder %v353, %v591
    %vm612 = vcmp.eq.f32.partialorder %v354, %v604
    %vm613 = vcmp.eq.f32.partialorder %v355, %v591
    %vm614 = vcmp.eq.f32.partialorder %v356, %v604
    %vm615 = vcmp.eq.f32.partialorder %v357, %v591
    %vm616 = vcmp.eq.f32.partialorder %v358, %v604
    %vm617 = vcmp.eq.f32.partialorder %v359, %v591
    %vm618 = vcmp.eq.f32.partialorder %v360, %v604
    %vm619 = vcmp.eq.f32.partialorder %v361, %v591
    %vm620 = vcmp.eq.f32.partialorder %v362, %v604
    %v621 = vsel %vm605, %v378, 64
    %v622 = vsel %vm606, %v378, 64
    %v623 = vsel %vm607, %v379, 64
    %v624 = vsel %vm608, %v379, 64
    %v625 = vsel %vm609, %v380, 64
    %v626 = vsel %vm610, %v380, 64
    %v627 = vsel %vm611, %v381, 64
    %v628 = vsel %vm612, %v381, 64
    %v629 = vsel %vm613, %v382, 64
    %v630 = vsel %vm614, %v382, 64
    %v631 = vsel %vm615, %v383, 64
    %v632 = vsel %vm616, %v383, 64
    %v633 = vsel %vm617, %v384, 64
    %v634 = vsel %vm618, %v384, 64
    %v635 = vsel %vm619, %v385, 64
    %v636 = vsel %vm620, %v385, 64
    %vm637 = vcmp.lt.s32.totalorder %v621, %v625
    %v638 = vsel %vm637, %v621, %v625
    %vm639 = vcmp.lt.s32.totalorder %v623, %v627
    %v640 = vsel %vm639, %v623, %v627
    %vm641 = vcmp.lt.s32.totalorder %v638, %v629
    %v642 = vsel %vm641, %v638, %v629
    %vm643 = vcmp.lt.s32.totalorder %v640, %v631
    %v644 = vsel %vm643, %v640, %v631
    %vm645 = vcmp.lt.s32.totalorder %v642, %v633
    %v646 = vsel %vm645, %v642, %v633
    %vm647 = vcmp.lt.s32.totalorder %v644, %v635
    %v648 = vsel %vm647, %v644, %v635
    %vm649 = vcmp.lt.s32.totalorder %v646, %v648
    %v650 = vsel %vm649, %v646, %v648
    %v651 = vrot.slane %v650, 4
    %vm652 = vcmp.lt.s32.totalorder %v650, %v651
    %v653 = vsel %vm652, %v650, %v651
    %v654 = vrot.slane %v653, 2
    %vm655 = vcmp.lt.s32.totalorder %v653, %v654
    %v656 = vsel %vm655, %v653, %v654
    %v657 = vrot.slane %v656, 1
    %vm658 = vcmp.lt.s32.totalorder %v656, %v657
    %v659 = vsel %vm658, %v656, %v657
    %vm660 = vcmp.lt.s32.totalorder %v622, %v626
    %v661 = vsel %vm660, %v622, %v626
    %vm662 = vcmp.lt.s32.totalorder %v624, %v628
    %v663 = vsel %vm662, %v624, %v628
    %vm664 = vcmp.lt.s32.totalorder %v661, %v630
    %v665 = vsel %vm664, %v661, %v630
    %vm666 = vcmp.lt.s32.totalorder %v663, %v632
    %v667 = vsel %vm666, %v663, %v632
    %vm668 = vcmp.lt.s32.totalorder %v665, %v634
    %v669 = vsel %vm668, %v665, %v634
    %vm670 = vcmp.lt.s32.totalorder %v667, %v636
    %v671 = vsel %vm670, %v667, %v636
    %vm672 = vcmp.lt.s32.totalorder %v669, %v671
    %v673 = vsel %vm672, %v669, %v671
    %v674 = vrot.slane %v673, 4
    %vm675 = vcmp.lt.s32.totalorder %v673, %v674
    %v676 = vsel %vm675, %v673, %v674
    %v677 = vrot.slane %v676, 2
    %vm678 = vcmp.lt.s32.totalorder %v676, %v677
    %v679 = vsel %vm678, %v676, %v677
    %v680 = vrot.slane %v679, 1
    %vm681 = vcmp.lt.s32.totalorder %v679, %v680
    %v682 = vsel %vm681, %v679, %v680
    %v683 = vld [vmem:[#allocation6] sm:$0xff]
    %v684 = vld [vmem:[#allocation6 + $0x8] sm:$0xff]
    %vm685 = vcmp.lt.f32.partialorder %v591, %v683
    %vm686 = vcmp.lt.f32.partialorder %v604, %v684
    %v687 = vsel %vm685, %v591, %v683
    %v688 = vsel %vm686, %v604, %v684
    %689 = vst [vmem:[#allocation6] sm:$0xff] %v687
    %690 = vst [vmem:[#allocation6 + $0x8] sm:$0xff] %v688
    %v691 = vld [vmem:[#allocation5] sm:$0xff]
    %v692 = vld [vmem:[#allocation5 + $0x8] sm:$0xff]
    %v693 = vsel %vm685, %v659, %v691
    %v694 = vsel %vm686, %v682, %v692
    %695 = vst [vmem:[#allocation5] sm:$0xff] %v693
    %696 = vst [vmem:[#allocation5 + $0x8] sm:$0xff] %v694
    %s697 = sadd.s32 0, 0
    %s698 = smul.u32 8, %s697
    %p699 = scmp.lt.s32.totalorder %s698, 7
    %s700 = scalar_select %p699, %s698, 7
    %s701 = smul.addr %s700, 8
    %s702 = scalar_lea.vmem %s4, %s701
    // Predicated region
    $region26: #{tpu_custom_call.1} parent=1 // pred_check
      _
    $region27: #{tpu_custom_call.1} parent=1 // pred_check_branch
      %704 = sbr.rel (0) target = $region29
    $region28: #{tpu_custom_call.1} parent=1 // pred_region
      %s705 = sadd.s32 0, 0
      %s706 = smul.u32 8, %s705
    $region29: #{tpu_custom_call.1} parent=1 // pred_fallthru
      _
    // Predicated region
    $region30: #{tpu_custom_call.1} parent=1 // pred_check
      _
    $region31: #{tpu_custom_call.1} parent=1 // pred_check_branch
      %708 = sbr.rel (0) target = $region33
    $region32: #{tpu_custom_call.1} parent=1 // pred_region
      %s710 = ssub.s32 256, 256
      %711 = vsyncadd [#allocation4], %s710
      %s713 = sshll.u32 [#allocation5], 4
      %s714 = int_to_ptr.vmem [resolvable:$true] %s713
      %716 = dma.vmem_to_hbm [thread:$0]  %s714, 256, %s5, [#allocation4]
    $region33: #{tpu_custom_call.1} parent=1 // pred_fallthru
      _
    // Predicated region
    $region34: #{tpu_custom_call.1} parent=1 // pred_check
      _
    $region35: #{tpu_custom_call.1} parent=1 // pred_check_branch
      %718 = sbr.rel (0) target = $region37
    $region36: #{tpu_custom_call.1} parent=1 // pred_region
      %s720 = ssub.s32 256, 256
      %721 = vsyncadd [#allocation7], %s720
      %s723 = sshll.u32 [#allocation6], 4
      %s724 = int_to_ptr.vmem [resolvable:$true] %s723
      %726 = dma.vmem_to_hbm [thread:$0]  %s724, 256, %s6, [#allocation7]
    $region37: #{tpu_custom_call.1} parent=1 // pred_fallthru
      _
    // Predicated region
    $region38: #{tpu_custom_call.1} parent=1 // pred_check
      _
    $region39: #{tpu_custom_call.1} parent=1 // pred_check_branch
      %728 = sbr.rel (0) target = $region41
    $region40: #{tpu_custom_call.1} parent=1 // pred_region
      %s729 = sadd.s32 0, 0
      %s730 = smul.u32 8, %s729
      %p731 = scmp.lt.s32.totalorder %s730, 7
      %s732 = scalar_select %p731, %s730, 7
      %s733 = smul.addr %s732, 8
      %s734 = scalar_lea.vmem %s4, %s733
    $region41: #{tpu_custom_call.1} parent=1 // pred_fallthru
      _
    // Predicated region
    $region42: #{tpu_custom_call.1} parent=1 // pred_check
      _
    $region43: #{tpu_custom_call.1} parent=1 // pred_check_branch
      %736 = sbr.rel (0) target = $region45
    $region44: #{tpu_custom_call.1} parent=1 // pred_region
      %737 = dma.done [#allocation4], 256
    $region45: #{tpu_custom_call.1} parent=1 // pred_fallthru
      _
    // Predicated region
    $region46: #{tpu_custom_call.1} parent=1 // pred_check
      _
    $region47: #{tpu_custom_call.1} parent=1 // pred_check_branch
      %739 = sbr.rel (0) target = $region49
    $region48: #{tpu_custom_call.1} parent=1 // pred_region
      %740 = dma.done [#allocation7], 256
    $region49: #{tpu_custom_call.1} parent=1 // pred_fallthru
      _
    %741 = vsyncpa [#allocation3], 1
    %742 = vsyncpa [#allocation4], 1
    %743 = vsyncpa [#allocation7], 1

// kernel: tpu_custom_call.1
$region0: #{tpu_custom_call.1}
  #allocation0 [shape = 'u32[]', space=smem, size = 0x4, offset = 0x4, fixed_abs, tag = 'smem constant byte address 0x4 - core index']
  #allocation1 [shape = 'u32[144,128]{1,0:T(1,128)}', space=vmem, size = 0x12000, scoped, tag = 'internal scratch']
  %s0 = inlined_call_operand.vmem [shape: f32[64,128], index: 0, kind: input, shape index: {}]
  %s1 = inlined_call_operand.hbm [shape: f32[128,256], index: 1, kind: input, shape index: {}]
  %s2 = inlined_call_operand.vmem [shape: f32[64,1], index: 2, kind: input, shape index: {}]
  %s3 = inlined_call_operand.vmem [shape: f32[1,256], index: 3, kind: input, shape index: {}]
  %s4 = inlined_call_operand.vmem [shape: s32[64,1], index: 4, kind: output, shape index: {0}]
  %s5 = inlined_call_operand.hbm [shape: s32[8,256], index: 5, kind: output, shape index: {1}]
  %s6 = inlined_call_operand.hbm [shape: f32[8,256], index: 6, kind: output, shape index: {2}]
  %7 = xla_tuple %s4, %s5, %s6
  %s8 = sld [smem:[#allocation0]]
  $region50: #{tpu_custom_call.1} parent=0
    _
  %s10 = ssub.s32 1, %s8
  %s11 = scalar_select 0, %s10, %s8
  $region1: #{tpu_custom_call.1} parent=0
    #allocation2 [shape = 'u8[131072]{0}', space=vmem, size = 0x20000, scoped, tag = 'input window, operand 1, single buffered']
    #allocation3 [shape = 's32[1]{0}', space=sflag, size = 0x4, scoped, tag = 'scoped memory for tpu_custom_call.1']
    #allocation4 [shape = 's32[1]{0}', space=sflag, size = 0x4, scoped, tag = 'scoped memory for tpu_custom_call.1']
    #allocation5 [shape = 'u8[8192]{0}', space=vmem, size = 0x2000, scoped, tag = 'output window, operand 1, single buffered']
    #allocation6 [shape = 'u8[8192]{0}', space=vmem, size = 0x2000, scoped, tag = 'output window, operand 2, single buffered']
    #allocation7 [shape = 's32[1]{0}', space=sflag, size = 0x4, scoped, tag = 'scoped memory for tpu_custom_call.1']
    %12 = vsyncpa [#allocation3], 0
    %13 = vsyncpa [#allocation4], 0
    %14 = vsyncpa [#allocation7], 0
    // Predicated region
    $region2: #{tpu_custom_call.1} parent=1 // pred_check
      _
    $region3: #{tpu_custom_call.1} parent=1 // pred_check_branch
      %16 = sbr.rel (0) target = $region5
    $region4: #{tpu_custom_call.1} parent=1 // pred_region
      %s17 = sadd.s32 0, 0
      %s18 = smul.u32 8, %s17
      %p19 = scmp.lt.s32.totalorder %s18, 7
      %s20 = scalar_select %p19, %s18, 7
      %s21 = smul.addr %s20, 8
      %s22 = scalar_lea.vmem %s0, %s21
      %s23 = sadd.s32 0, 0
      %s24 = smul.u32 8, %s23
    $region5: #{tpu_custom_call.1} parent=1 // pred_fallthru
      _
    // Predicated region
    $region6: #{tpu_custom_call.1} parent=1 // pred_check
      _
    $region7: #{tpu_custom_call.1} parent=1 // pred_check_branch
      %26 = sbr.rel (0) target = $region9
    $region8: #{tpu_custom_call.1} parent=1 // pred_region
      %s28 = ssub.s32 4096, 4096
      %29 = vsyncadd [#allocation3], %s28
      %s30 = sshll.u32 [#allocation2], 4
      %s31 = int_to_ptr.vmem [resolvable:$true] %s30
      %36 = dma.hbm_to_vmem [thread:$0]  %s1, 4096, %s31, [#allocation3], 256, 256, 16
    $region9: #{tpu_custom_call.1} parent=1 // pred_fallthru
      _
    // Predicated region
    $region10: #{tpu_custom_call.1} parent=1 // pred_check
      _
    $region11: #{tpu_custom_call.1} parent=1 // pred_check_branch
      %38 = sbr.rel (0) target = $region13
    $region12: #{tpu_custom_call.1} parent=1 // pred_region
      %s39 = sadd.s32 0, 0
      %s40 = smul.u32 8, %s39
      %p41 = scmp.lt.s32.totalorder %s40, 7
      %s42 = scalar_select %p41, %s40, 7
      %s43 = smul.addr %s42, 8
      %s44 = scalar_lea.vmem %s2, %s43
      %s45 = sadd.s32 0, 0
      %s46 = smul.u32 8, %s45
    $region13: #{tpu_custom_call.1} parent=1 // pred_fallthru
      _
    // Predicated region
    $region14: #{tpu_custom_call.1} parent=1 // pred_check
      _
    $region15: #{tpu_custom_call.1} parent=1 // pred_check_branch
      %48 = sbr.rel (0) target = $region17
    $region16: #{tpu_custom_call.1} parent=1 // pred_region
      _
    $region17: #{tpu_custom_call.1} parent=1 // pred_fallthru
      _
    // Predicated region
    $region18: #{tpu_custom_call.1} parent=1 // pred_check
      _
    $region19: #{tpu_custom_call.1} parent=1 // pred_check_branch
      %50 = sbr.rel (0) target = $region21
    $region20: #{tpu_custom_call.1} parent=1 // pred_region
      %51 = dma.done [#allocation3], 4096
    $region21: #{tpu_custom_call.1} parent=1 // pred_fallthru
      _
    %s52 = sadd.s32 0, 0
    %s53 = smul.u32 8, %s52
    %p54 = scmp.lt.s32.totalorder %s53, 7
    %s55 = scalar_select %p54, %s53, 7
    %s56 = smul.addr %s55, 8
    %s57 = scalar_lea.vmem %s0, %s56
    %s58 = sadd.s32 0, 0
    %s59 = smul.u32 8, %s58
    %p60 = scmp.lt.s32.totalorder %s59, 7
    %s61 = scalar_select %p60, %s59, 7
    %s62 = smul.addr %s61, 8
    %s63 = scalar_lea.vmem %s2, %s62
    %s64 = sadd.s32 0, 0
    %s65 = smul.u32 8, %s64
    %p66 = scmp.lt.s32.totalorder %s65, 7
    %s67 = scalar_select %p66, %s65, 7
    %s68 = smul.addr %s67, 8
    %s69 = scalar_lea.vmem %s4, %s68
    %s70 = sadd.s32 0, 0
    %s71 = smul.u32 8, %s70
    %p72 = scmp.lt.s32.totalorder %s71, 7
    %s73 = scalar_select %p72, %s71, 7
    %s74 = smul.addr %s73, 8
    %s75 = scalar_lea.vmem %s0, %s74
    %s76 = sadd.s32 0, 0
    %s77 = smul.u32 8, %s76
    %s78 = sadd.s32 0, 0
    %s79 = smul.u32 8, %s78
    %p80 = scmp.lt.s32.totalorder %s79, 7
    %s81 = scalar_select %p80, %s79, 7
    %s82 = smul.addr %s81, 8
    %s83 = scalar_lea.vmem %s2, %s82
    %s84 = sadd.s32 0, 0
    %s85 = smul.u32 8, %s84
    %s86 = sadd.s32 0, 0
    %s87 = smul.u32 8, %s86
    %p88 = scmp.lt.s32.totalorder %s87, 7
    %s89 = scalar_select %p88, %s87, 7
    %s90 = smul.addr %s89, 8
    %s91 = scalar_lea.vmem %s4, %s90
    %s92 = sadd.s32 0, 0
    %s93 = smul.u32 8, %s92
    %p94 = scmp.eq.s32.totalorder 0, 0
    // Predicated region
    $region22: #{tpu_custom_call.1} parent=1 // pred_check
      %p95 = pneg %p94
    $region23: #{tpu_custom_call.1} parent=1 // pred_check_branch
      %97 = sbr.rel (%p95) target = $region25
    $region24: #{tpu_custom_call.1} parent=1 // pred_region
      %98 = vst [vmem:[#allocation6] sm:$0xff] inf
      %99 = vst [vmem:[#allocation6 + $0x8] sm:$0xff] inf
      %100 = vst [vmem:[#allocation5] sm:$0xff] 0
      %101 = vst [vmem:[#allocation5 + $0x8] sm:$0xff] 0
    $region25: #{tpu_custom_call.1} parent=1 // pred_fallthru
      _
    %v102 = vld [vmem:[%s75] sm:$0xff]
    %v103 = vld [vmem:[%s75 + $0x8] sm:$0xff]
    %v104 = vld [vmem:[%s75 + $0x10] sm:$0xff]
    %v105 = vld [vmem:[%s75 + $0x18] sm:$0xff]
    %v106 = vld [vmem:[%s75 + $0x20] sm:$0xff]
    %v107 = vld [vmem:[%s75 + $0x28] sm:$0xff]
    %v108 = vld [vmem:[%s75 + $0x30] sm:$0xff]
    %v109 = vld [vmem:[%s75 + $0x38] sm:$0xff]
    %v110 = vld [vmem:[#allocation2] sm:$0xff]
    %v111 = vld [vmem:[#allocation2 + $0x8] sm:$0xff]
    %v112 = vld [vmem:[#allocation2 + $0x10] sm:$0xff]
    %v113 = vld [vmem:[#allocation2 + $0x18] sm:$0xff]
    %v114 = vld [vmem:[#allocation2 + $0x20] sm:$0xff]
    %v115 = vld [vmem:[#allocation2 + $0x28] sm:$0xff]
    %v116 = vld [vmem:[#allocation2 + $0x30] sm:$0xff]
    %v117 = vld [vmem:[#allocation2 + $0x38] sm:$0xff]
    %v118 = vld [vmem:[#allocation2 + $0x40] sm:$0xff]
    %v119 = vld [vmem:[#allocation2 + $0x48] sm:$0xff]
    %v120 = vld [vmem:[#allocation2 + $0x50] sm:$0xff]
    %v121 = vld [vmem:[#allocation2 + $0x58] sm:$0xff]
    %v122 = vld [vmem:[#allocation2 + $0x60] sm:$0xff]
    %v123 = vld [vmem:[#allocation2 + $0x68] sm:$0xff]
    %v124 = vld [vmem:[#allocation2 + $0x70] sm:$0xff]
    %v125 = vld [vmem:[#allocation2 + $0x78] sm:$0xff]
    %v126 = vld [vmem:[#allocation2 + $0x80] sm:$0xff]
    %v127 = vld [vmem:[#allocation2 + $0x88] sm:$0xff]
    %v128 = vld [vmem:[#allocation2 + $0x90] sm:$0xff]
    %v129 = vld [vmem:[#allocation2 + $0x98] sm:$0xff]
    %v130 = vld [vmem:[#allocation2 + $0xa0] sm:$0xff]
    %v131 = vld [vmem:[#allocation2 + $0xa8] sm:$0xff]
    %v132 = vld [vmem:[#allocation2 + $0xb0] sm:$0xff]
    %v133 = vld [vmem:[#allocation2 + $0xb8] sm:$0xff]
    %v134 = vld [vmem:[#allocation2 + $0xc0] sm:$0xff]
    %v135 = vld [vmem:[#allocation2 + $0xc8] sm:$0xff]
    %v136 = vld [vmem:[#allocation2 + $0xd0] sm:$0xff]
    %v137 = vld [vmem:[#allocation2 + $0xd8] sm:$0xff]
    %v138 = vld [vmem:[#allocation2 + $0xe0] sm:$0xff]
    %v139 = vld [vmem:[#allocation2 + $0xe8] sm:$0xff]
    %v140 = vld [vmem:[#allocation2 + $0xf0] sm:$0xff]
    %v141 = vld [vmem:[#allocation2 + $0xf8] sm:$0xff]
    %142 = vmatprep.subr.mxu0 %v141
    %143 = vmatpush1.msra.mxu0 %v140
    %144 = vmatprep.subr.mxu0 %v139
    %145 = vmatpush1.msra.mxu0 %v138
    %146 = vmatprep.subr.mxu0 %v137
    %147 = vmatpush1.msra.mxu0 %v136
    %148 = vmatprep.subr.mxu0 %v135
    %149 = vmatpush1.msra.mxu0 %v134
    %150 = vmatprep.subr.mxu0 %v133
    %151 = vmatpush1.msra.mxu0 %v132
    %152 = vmatprep.subr.mxu0 %v131
    %153 = vmatpush1.msra.mxu0 %v130
    %154 = vmatprep.subr.mxu0 %v129
    %155 = vmatpush1.msra.mxu0 %v128
    %156 = vmatprep.subr.mxu0 %v127
    %157 = vmatpush1.msra.mxu0 %v126
    %158 = vmatprep.subr.mxu0 %v125
    %159 = vmatpush1.msra.mxu0 %v124
    %160 = vmatprep.subr.mxu0 %v123
    %161 = vmatpush1.msra.mxu0 %v122
    %162 = vmatprep.subr.mxu0 %v121
    %163 = vmatpush1.msra.mxu0 %v120
    %164 = vmatprep.subr.mxu0 %v119
    %165 = vmatpush1.msra.mxu0 %v118
    %166 = vmatprep.subr.mxu0 %v117
    %167 = vmatpush1.msra.mxu0 %v116
    %168 = vmatprep.subr.mxu0 %v115
    %169 = vmatpush1.msra.mxu0 %v114
    %170 = vmatprep.subr.mxu0 %v113
    %171 = vmatpush1.msra.mxu0 %v112
    %172 = vmatprep.subr.mxu0 %v111
    %173 = vmatpush1.msra.mxu0 %v110
    %174 = vmatprep.subr.mxu0 0.0
    %175 = vmatpush2.msra.mxu0 0.0
    %176 = vmatprep.subr.mxu0 0.0
    %177 = vmatpush2.msra.mxu0 0.0
    %178 = vmatprep.subr.mxu0 0.0
    %179 = vmatpush2.msra.mxu0 0.0
    %180 = vmatprep.subr.mxu0 0.0
    %181 = vmatpush2.msra.mxu0 0.0
    %182 = vmatprep.subr.mxu0 0.0
    %183 = vmatpush2.msra.mxu0 0.0
    %184 = vmatprep.subr.mxu0 0.0
    %185 = vmatpush2.msra.mxu0 0.0
    %186 = vmatprep.subr.mxu0 0.0
    %187 = vmatpush2.msra.mxu0 0.0
    %188 = vmatprep.subr.mxu0 0.0
    %189 = vmatpush2.msra.mxu0 0.0
    %190 = vmatprep.subr.mxu0 0.0
    %191 = vmatpush2.msra.mxu0 0.0
    %192 = vmatprep.subr.mxu0 0.0
    %193 = vmatpush2.msra.mxu0 0.0
    %194 = vmatprep.subr.mxu0 0.0
    %195 = vmatpush2.msra.mxu0 0.0
    %196 = vmatprep.subr.mxu0 0.0
    %197 = vmatpush2.msra.mxu0 0.0
    %198 = vmatprep.subr.mxu0 0.0
    %199 = vmatpush2.msra.mxu0 0.0
    %200 = vmatprep.subr.mxu0 0.0
    %201 = vmatpush2.msra.mxu0 0.0
    %202 = vmatprep.subr.mxu0 0.0
    %203 = vmatpush2.msra.mxu0 0.0
    %204 = vmatprep.subr.mxu0 0.0
    %205 = vmatpush2.msra.mxu0 0.0
    %206 = vmatprep.mubr.f32.mxu0 0.0
    %207 = vmatmul.mubr.f32.gmra.mxu0 %v102
    %v208 = vpop.f32.mrf.mxu0
    %v209 = vadd.f32 0.0, %v208
    %v210 = vpop.f32.mrf.mxu0
    %v211 = vadd.f32 0.0, %v210
    %212 = vmatprep.mubr.f32.mxu0 0.0
    %213 = vmatmul.mubr.f32.gmra.mxu0 %v103
    %v214 = vpop.f32.mrf.mxu0
    %v215 = vadd.f32 0.0, %v214
    %v216 = vpop.f32.mrf.mxu0
    %v217 = vadd.f32 0.0, %v216
    %218 = vmatprep.mubr.f32.mxu0 0.0
    %219 = vmatmul.mubr.f32.gmra.mxu0 %v104
    %v220 = vpop.f32.mrf.mxu0
    %v221 = vadd.f32 0.0, %v220
    %v222 = vpop.f32.mrf.mxu0
    %v223 = vadd.f32 0.0, %v222
    %224 = vmatprep.mubr.f32.mxu0 0.0
    %225 = vmatmul.mubr.f32.gmra.mxu0 %v105
    %v226 = vpop.f32.mrf.mxu0
    %v227 = vadd.f32 0.0, %v226
    %v228 = vpop.f32.mrf.mxu0
    %v229 = vadd.f32 0.0, %v228
    %230 = vmatprep.mubr.f32.mxu0 0.0
    %231 = vmatmul.mubr.f32.gmra.mxu0 %v106
    %v232 = vpop.f32.mrf.mxu0
    %v233 = vadd.f32 0.0, %v232
    %v234 = vpop.f32.mrf.mxu0
    %v235 = vadd.f32 0.0, %v234
    %236 = vmatprep.mubr.f32.mxu0 0.0
    %237 = vmatmul.mubr.f32.gmra.mxu0 %v107
    %v238 = vpop.f32.mrf.mxu0
    %v239 = vadd.f32 0.0, %v238
    %v240 = vpop.f32.mrf.mxu0
    %v241 = vadd.f32 0.0, %v240
    %242 = vmatprep.mubr.f32.mxu0 0.0
    %243 = vmatmul.mubr.f32.gmra.mxu0 %v108
    %v244 = vpop.f32.mrf.mxu0
    %v245 = vadd.f32 0.0, %v244
    %v246 = vpop.f32.mrf.mxu0
    %v247 = vadd.f32 0.0, %v246
    %248 = vmatprep.mubr.f32.mxu0 0.0
    %249 = vmatmul.mubr.f32.gmra.mxu0 %v109
    %v250 = vpop.f32.mrf.mxu0
    %v251 = vadd.f32 0.0, %v250
    %v252 = vpop.f32.mrf.mxu0
    %v253 = vadd.f32 0.0, %v252
    %254 = vdwg.mxu0
    %v255 = vld [vmem:[%s83] sm:$0xff]
    %v256 = vld [vmem:[%s83 + $0x8] sm:$0xff]
    %v257 = vld [vmem:[%s83 + $0x10] sm:$0xff]
    %v258 = vld [vmem:[%s83 + $0x18] sm:$0xff]
    %v259 = vld [vmem:[%s83 + $0x20] sm:$0xff]
    %v260 = vld [vmem:[%s83 + $0x28] sm:$0xff]
    %v261 = vld [vmem:[%s83 + $0x30] sm:$0xff]
    %v262 = vld [vmem:[%s83 + $0x38] sm:$0xff]
    %v263 = vld [vmem:[%s3] sm:$0x3]
    %265 = vset.pattern.permute.xlu0 0
    %266 = vperm.xlu0 %265, %v255
    %v267 = vpop.permute.xlu0 %266
    %270 = vset.pattern.permute.xlu0 0
    %271 = vperm.xlu0 %270, %v256
    %v272 = vpop.permute.xlu0 %271
    %275 = vset.pattern.permute.xlu0 0
    %276 = vperm.xlu0 %275, %v257
    %v277 = vpop.permute.xlu0 %276
    %280 = vset.pattern.permute.xlu0 0
    %281 = vperm.xlu0 %280, %v258
    %v282 = vpop.permute.xlu0 %281
    %285 = vset.pattern.permute.xlu0 0
    %286 = vperm.xlu0 %285, %v259
    %v287 = vpop.permute.xlu0 %286
    %290 = vset.pattern.permute.xlu0 0
    %291 = vperm.xlu0 %290, %v260
    %v292 = vpop.permute.xlu0 %291
    %295 = vset.pattern.permute.xlu0 0
    %296 = vperm.xlu0 %295, %v261
    %v297 = vpop.permute.xlu0 %296
    %300 = vset.pattern.permute.xlu0 0
    %301 = vperm.xlu0 %300, %v262
    %v302 = vpop.permute.xlu0 %301
    %v305 = vlaneseq
    %v306 = vshrl.u32 %v305, 7
    %v307 = vsub.s32 0, %v306
    %v308 = vrot.slane %v263, %v307
    %v309 = vlaneseq
    %v310 = vshrl.u32 %v309, 7
    %v311 = vsub.s32 1, %v310
    %v312 = vrot.slane %v263, %v311
    %v315 = vadd.f32 %v267, %v308
    %v316 = vadd.f32 %v267, %v312
    %v317 = vadd.f32 %v272, %v308
    %v318 = vadd.f32 %v272, %v312
    %v319 = vadd.f32 %v277, %v308
    %v320 = vadd.f32 %v277, %v312
    %v321 = vadd.f32 %v282, %v308
    %v322 = vadd.f32 %v282, %v312
    %v323 = vadd.f32 %v287, %v308
    %v324 = vadd.f32 %v287, %v312
    %v325 = vadd.f32 %v292, %v308
    %v326 = vadd.f32 %v292, %v312
    %v327 = vadd.f32 %v297, %v308
    %v328 = vadd.f32 %v297, %v312
    %v329 = vadd.f32 %v302, %v308
    %v330 = vadd.f32 %v302, %v312
    %v331 = vmul.f32 %v209, 2.0
    %v332 = vmul.f32 %v211, 2.0
    %v333 = vmul.f32 %v215, 2.0
    %v334 = vmul.f32 %v217, 2.0
    %v335 = vmul.f32 %v221, 2.0
    %v336 = vmul.f32 %v223, 2.0
    %v337 = vmul.f32 %v227, 2.0
    %v338 = vmul.f32 %v229, 2.0
    %v339 = vmul.f32 %v233, 2.0
    %v340 = vmul.f32 %v235, 2.0
    %v341 = vmul.f32 %v239, 2.0
    %v342 = vmul.f32 %v241, 2.0
    %v343 = vmul.f32 %v245, 2.0
    %v344 = vmul.f32 %v247, 2.0
    %v345 = vmul.f32 %v251, 2.0
    %v346 = vmul.f32 %v253, 2.0
    %v347 = vsub.f32 %v315, %v331
    %v348 = vsub.f32 %v316, %v332
    %v349 = vsub.f32 %v317, %v333
    %v350 = vsub.f32 %v318, %v334
    %v351 = vsub.f32 %v319, %v335
    %v352 = vsub.f32 %v320, %v336
    %v353 = vsub.f32 %v321, %v337
    %v354 = vsub.f32 %v322, %v338
    %v355 = vsub.f32 %v323, %v339
    %v356 = vsub.f32 %v324, %v340
    %v357 = vsub.f32 %v325, %v341
    %v358 = vsub.f32 %v326, %v342
    %v359 = vsub.f32 %v327, %v343
    %v360 = vsub.f32 %v328, %v344
    %v361 = vsub.f32 %v329, %v345
    %v362 = vsub.f32 %v330, %v346
    %v363 = vlaneseq
    %v364 = vand.u32 %v363, 127
    %v365 = vadd.s32 %v364, 128
    %s366 = sadd.s32 0, 0
    %s367 = smul.u32 %s366, 64
    %v368 = vlaneseq
    %v369 = vshrl.u32 %v368, 7
    %v370 = vadd.s32 %v369, 8
    %v371 = vadd.s32 %v369, 16
    %v372 = vadd.s32 %v369, 24
    %v373 = vadd.s32 %v369, 32
    %v374 = vadd.s32 %v369, 40
    %v375 = vadd.s32 %v369, 48
    %v376 = vadd.s32 %v369, 56
    %v377 = vstv %s367
    %v378 = vadd.s32 %v369, %v377
    %v379 = vadd.s32 %v370, %v377
    %v380 = vadd.s32 %v371, %v377
    %v381 = vadd.s32 %v372, %v377
    %v382 = vadd.s32 %v373, %v377
    %v383 = vadd.s32 %v374, %v377
    %v384 = vadd.s32 %v375, %v377
    %v385 = vadd.s32 %v376, %v377
    %v386 = vmin.f32 %v347, %v348
    %387 = vmin.xlane.f32.xlu0 %v386
    %v388 = vpop.xlane.xlu0 %387
    %v389 = vmin.f32 %v349, %v350
    %390 = vmin.xlane.f32.xlu0 %v389
    %v391 = vpop.xlane.xlu0 %390
    %v392 = vmin.f32 %v351, %v352
    %393 = vmin.xlane.f32.xlu0 %v392
    %v394 = vpop.xlane.xlu0 %393
    %v395 = vmin.f32 %v353, %v354
    %396 = vmin.xlane.f32.xlu0 %v395
    %v397 = vpop.xlane.xlu0 %396
    %v398 = vmin.f32 %v355, %v356
    %399 = vmin.xlane.f32.xlu0 %v398
    %v400 = vpop.xlane.xlu0 %399
    %v401 = vmin.f32 %v357, %v358
    %402 = vmin.xlane.f32.xlu0 %v401
    %v403 = vpop.xlane.xlu0 %402
    %v404 = vmin.f32 %v359, %v360
    %405 = vmin.xlane.f32.xlu0 %v404
    %v406 = vpop.xlane.xlu0 %405
    %v407 = vmin.f32 %v361, %v362
    %408 = vmin.xlane.f32.xlu0 %v407
    %v409 = vpop.xlane.xlu0 %408
    %vm410 = vcmp.eq.f32.partialorder %v347, %v388
    %vm411 = vcmp.eq.f32.partialorder %v348, %v388
    %vm412 = vcmp.eq.f32.partialorder %v349, %v391
    %vm413 = vcmp.eq.f32.partialorder %v350, %v391
    %vm414 = vcmp.eq.f32.partialorder %v351, %v394
    %vm415 = vcmp.eq.f32.partialorder %v352, %v394
    %vm416 = vcmp.eq.f32.partialorder %v353, %v397
    %vm417 = vcmp.eq.f32.partialorder %v354, %v397
    %vm418 = vcmp.eq.f32.partialorder %v355, %v400
    %vm419 = vcmp.eq.f32.partialorder %v356, %v400
    %vm420 = vcmp.eq.f32.partialorder %v357, %v403
    %vm421 = vcmp.eq.f32.partialorder %v358, %v403
    %vm422 = vcmp.eq.f32.partialorder %v359, %v406
    %vm423 = vcmp.eq.f32.partialorder %v360, %v406
    %vm424 = vcmp.eq.f32.partialorder %v361, %v409
    %vm425 = vcmp.eq.f32.partialorder %v362, %v409
    %v426 = vsel %vm410, %v364, 256
    %v427 = vsel %vm411, %v365, 256
    %v428 = vsel %vm412, %v364, 256
    %v429 = vsel %vm413, %v365, 256
    %v430 = vsel %vm414, %v364, 256
    %v431 = vsel %vm415, %v365, 256
    %v432 = vsel %vm416, %v364, 256
    %v433 = vsel %vm417, %v365, 256
    %v434 = vsel %vm418, %v364, 256
    %v435 = vsel %vm419, %v365, 256
    %v436 = vsel %vm420, %v364, 256
    %v437 = vsel %vm421, %v365, 256
    %v438 = vsel %vm422, %v364, 256
    %v439 = vsel %vm423, %v365, 256
    %v440 = vsel %vm424, %v364, 256
    %v441 = vsel %vm425, %v365, 256
    %vm442 = vcmp.lt.s32.totalorder %v426, %v427
    %v443 = vsel %vm442, %v426, %v427
    %v444 = vand.u32 %v443, 65535
    %v445 = vshra.s32 %v443, 16
    %v446 = vcvt.s32.f32 %v444
    %v447 = vcvt.s32.f32 %v445
    %448 = vmin.xlane.f32.xlu0 %v447
    %v449 = vpop.xlane.xlu0 %448
    %vm450 = vcmp.eq.f32.partialorder %v447, %v449
    %v451 = vsel %vm450, %v446, inf
    %452 = vmin.xlane.f32.xlu0 %v451
    %v453 = vpop.xlane.xlu0 %452
    %v454 = vcvt.f32.s32 %v453
    %v455 = vcvt.f32.s32 %v449
    %v456 = vshll.u32 %v455, 16
    %v457 = vadd.s32 %v456, %v454
    %vm458 = vcmp.lt.s32.totalorder %v428, %v429
    %v459 = vsel %vm458, %v428, %v429
    %v460 = vand.u32 %v459, 65535
    %v461 = vshra.s32 %v459, 16
    %v462 = vcvt.s32.f32 %v460
    %v463 = vcvt.s32.f32 %v461
    %464 = vmin.xlane.f32.xlu0 %v463
    %v465 = vpop.xlane.xlu0 %464
    %vm466 = vcmp.eq.f32.partialorder %v463, %v465
    %v467 = vsel %vm466, %v462, inf
    %468 = vmin.xlane.f32.xlu0 %v467
    %v469 = vpop.xlane.xlu0 %468
    %v470 = vcvt.f32.s32 %v469
    %v471 = vcvt.f32.s32 %v465
    %v472 = vshll.u32 %v471, 16
    %v473 = vadd.s32 %v472, %v470
    %vm474 = vcmp.lt.s32.totalorder %v430, %v431
    %v475 = vsel %vm474, %v430, %v431
    %v476 = vand.u32 %v475, 65535
    %v477 = vshra.s32 %v475, 16
    %v478 = vcvt.s32.f32 %v476
    %v479 = vcvt.s32.f32 %v477
    %480 = vmin.xlane.f32.xlu0 %v479
    %v481 = vpop.xlane.xlu0 %480
    %vm482 = vcmp.eq.f32.partialorder %v479, %v481
    %v483 = vsel %vm482, %v478, inf
    %484 = vmin.xlane.f32.xlu0 %v483
    %v485 = vpop.xlane.xlu0 %484
    %v486 = vcvt.f32.s32 %v485
    %v487 = vcvt.f32.s32 %v481
    %v488 = vshll.u32 %v487, 16
    %v489 = vadd.s32 %v488, %v486
    %vm490 = vcmp.lt.s32.totalorder %v432, %v433
    %v491 = vsel %vm490, %v432, %v433
    %v492 = vand.u32 %v491, 65535
    %v493 = vshra.s32 %v491, 16
    %v494 = vcvt.s32.f32 %v492
    %v495 = vcvt.s32.f32 %v493
    %496 = vmin.xlane.f32.xlu0 %v495
    %v497 = vpop.xlane.xlu0 %496
    %vm498 = vcmp.eq.f32.partialorder %v495, %v497
    %v499 = vsel %vm498, %v494, inf
    %500 = vmin.xlane.f32.xlu0 %v499
    %v501 = vpop.xlane.xlu0 %500
    %v502 = vcvt.f32.s32 %v501
    %v503 = vcvt.f32.s32 %v497
    %v504 = vshll.u32 %v503, 16
    %v505 = vadd.s32 %v504, %v502
    %vm506 = vcmp.lt.s32.totalorder %v434, %v435
    %v507 = vsel %vm506, %v434, %v435
    %v508 = vand.u32 %v507, 65535
    %v509 = vshra.s32 %v507, 16
    %v510 = vcvt.s32.f32 %v508
    %v511 = vcvt.s32.f32 %v509
    %512 = vmin.xlane.f32.xlu0 %v511
    %v513 = vpop.xlane.xlu0 %512
    %vm514 = vcmp.eq.f32.partialorder %v511, %v513
    %v515 = vsel %vm514, %v510, inf
    %516 = vmin.xlane.f32.xlu0 %v515
    %v517 = vpop.xlane.xlu0 %516
    %v518 = vcvt.f32.s32 %v517
    %v519 = vcvt.f32.s32 %v513
    %v520 = vshll.u32 %v519, 16
    %v521 = vadd.s32 %v520, %v518
    %vm522 = vcmp.lt.s32.totalorder %v436, %v437
    %v523 = vsel %vm522, %v436, %v437
    %v524 = vand.u32 %v523, 65535
    %v525 = vshra.s32 %v523, 16
    %v526 = vcvt.s32.f32 %v524
    %v527 = vcvt.s32.f32 %v525
    %528 = vmin.xlane.f32.xlu0 %v527
    %v529 = vpop.xlane.xlu0 %528
    %vm530 = vcmp.eq.f32.partialorder %v527, %v529
    %v531 = vsel %vm530, %v526, inf
    %532 = vmin.xlane.f32.xlu0 %v531
    %v533 = vpop.xlane.xlu0 %532
    %v534 = vcvt.f32.s32 %v533
    %v535 = vcvt.f32.s32 %v529
    %v536 = vshll.u32 %v535, 16
    %v537 = vadd.s32 %v536, %v534
    %vm538 = vcmp.lt.s32.totalorder %v438, %v439
    %v539 = vsel %vm538, %v438, %v439
    %v540 = vand.u32 %v539, 65535
    %v541 = vshra.s32 %v539, 16
    %v542 = vcvt.s32.f32 %v540
    %v543 = vcvt.s32.f32 %v541
    %544 = vmin.xlane.f32.xlu0 %v543
    %v545 = vpop.xlane.xlu0 %544
    %vm546 = vcmp.eq.f32.partialorder %v543, %v545
    %v547 = vsel %vm546, %v542, inf
    %548 = vmin.xlane.f32.xlu0 %v547
    %v549 = vpop.xlane.xlu0 %548
    %v550 = vcvt.f32.s32 %v549
    %v551 = vcvt.f32.s32 %v545
    %v552 = vshll.u32 %v551, 16
    %v553 = vadd.s32 %v552, %v550
    %vm554 = vcmp.lt.s32.totalorder %v440, %v441
    %v555 = vsel %vm554, %v440, %v441
    %v556 = vand.u32 %v555, 65535
    %v557 = vshra.s32 %v555, 16
    %v558 = vcvt.s32.f32 %v556
    %v559 = vcvt.s32.f32 %v557
    %560 = vmin.xlane.f32.xlu0 %v559
    %v561 = vpop.xlane.xlu0 %560
    %vm562 = vcmp.eq.f32.partialorder %v559, %v561
    %v563 = vsel %vm562, %v558, inf
    %564 = vmin.xlane.f32.xlu0 %v563
    %v565 = vpop.xlane.xlu0 %564
    %v566 = vcvt.f32.s32 %v565
    %v567 = vcvt.f32.s32 %v561
    %v568 = vshll.u32 %v567, 16
    %v569 = vadd.s32 %v568, %v566
    %vm570 = vcmask 7168
    %571 = vst.msk [vmem:[%s91] sm:$0xff] %vm570, %v457
    %572 = vst.msk [vmem:[%s91 + $0x8] sm:$0xff] %vm570, %v473
    %573 = vst.msk [vmem:[%s91 + $0x10] sm:$0xff] %vm570, %v489
    %574 = vst.msk [vmem:[%s91 + $0x18] sm:$0xff] %vm570, %v505
    %575 = vst.msk [vmem:[%s91 + $0x20] sm:$0xff] %vm570, %v521
    %576 = vst.msk [vmem:[%s91 + $0x28] sm:$0xff] %vm570, %v537
    %577 = vst.msk [vmem:[%s91 + $0x30] sm:$0xff] %vm570, %v553
    %578 = vst.msk [vmem:[%s91 + $0x38] sm:$0xff] %vm570, %v569
    %v579 = vmin.f32 %v347, %v351
    %v580 = vmin.f32 %v349, %v353
    %v581 = vmin.f32 %v579, %v355
    %v582 = vmin.f32 %v580, %v357
    %v583 = vmin.f32 %v581, %v359
    %v584 = vmin.f32 %v582, %v361
    %v585 = vmin.f32 %v583, %v584
    %v586 = vrot.slane %v585, 4
    %v587 = vmin.f32 %v585, %v586
    %v588 = vrot.slane %v587, 2
    %v589 = vmin.f32 %v587, %v588
    %v590 = vrot.slane %v589, 1
    %v591 = vmin.f32 %v589, %v590
    %v592 = vmin.f32 %v348, %v352
    %v593 = vmin.f32 %v350, %v354
    %v594 = vmin.f32 %v592, %v356
    %v595 = vmin.f32 %v593, %v358
    %v596 = vmin.f32 %v594, %v360
    %v597 = vmin.f32 %v595, %v362
    %v598 = vmin.f32 %v596, %v597
    %v599 = vrot.slane %v598, 4
    %v600 = vmin.f32 %v598, %v599
    %v601 = vrot.slane %v600, 2
    %v602 = vmin.f32 %v600, %v601
    %v603 = vrot.slane %v602, 1
    %v604 = vmin.f32 %v602, %v603
    %vm605 = vcmp.eq.f32.partialorder %v347, %v591
    %vm606 = vcmp.eq.f32.partialorder %v348, %v604
    %vm607 = vcmp.eq.f32.partialorder %v349, %v591
    %vm608 = vcmp.eq.f32.partialorder %v350, %v604
    %vm609 = vcmp.eq.f32.partialorder %v351, %v591
    %vm610 = vcmp.eq.f32.partialorder %v352, %v604
    %vm611 = vcmp.eq.f32.partialorder %v353, %v591
    %vm612 = vcmp.eq.f32.partialorder %v354, %v604
    %vm613 = vcmp.eq.f32.partialorder %v355, %v591
    %vm614 = vcmp.eq.f32.partialorder %v356, %v604
    %vm615 = vcmp.eq.f32.partialorder %v357, %v591
    %vm616 = vcmp.eq.f32.partialorder %v358, %v604
    %vm617 = vcmp.eq.f32.partialorder %v359, %v591
    %vm618 = vcmp.eq.f32.partialorder %v360, %v604
    %vm619 = vcmp.eq.f32.partialorder %v361, %v591
    %vm620 = vcmp.eq.f32.partialorder %v362, %v604
    %v621 = vsel %vm605, %v378, 64
    %v622 = vsel %vm606, %v378, 64
    %v623 = vsel %vm607, %v379, 64
    %v624 = vsel %vm608, %v379, 64
    %v625 = vsel %vm609, %v380, 64
    %v626 = vsel %vm610, %v380, 64
    %v627 = vsel %vm611, %v381, 64
    %v628 = vsel %vm612, %v381, 64
    %v629 = vsel %vm613, %v382, 64
    %v630 = vsel %vm614, %v382, 64
    %v631 = vsel %vm615, %v383, 64
    %v632 = vsel %vm616, %v383, 64
    %v633 = vsel %vm617, %v384, 64
    %v634 = vsel %vm618, %v384, 64
    %v635 = vsel %vm619, %v385, 64
    %v636 = vsel %vm620, %v385, 64
    %vm637 = vcmp.lt.s32.totalorder %v621, %v625
    %v638 = vsel %vm637, %v621, %v625
    %vm639 = vcmp.lt.s32.totalorder %v623, %v627
    %v640 = vsel %vm639, %v623, %v627
    %vm641 = vcmp.lt.s32.totalorder %v638, %v629
    %v642 = vsel %vm641, %v638, %v629
    %vm643 = vcmp.lt.s32.totalorder %v640, %v631
    %v644 = vsel %vm643, %v640, %v631
    %vm645 = vcmp.lt.s32.totalorder %v642, %v633
    %v646 = vsel %vm645, %v642, %v633
    %vm647 = vcmp.lt.s32.totalorder %v644, %v635
    %v648 = vsel %vm647, %v644, %v635
    %vm649 = vcmp.lt.s32.totalorder %v646, %v648
    %v650 = vsel %vm649, %v646, %v648
    %v651 = vrot.slane %v650, 4
    %vm652 = vcmp.lt.s32.totalorder %v650, %v651
    %v653 = vsel %vm652, %v650, %v651
    %v654 = vrot.slane %v653, 2
    %vm655 = vcmp.lt.s32.totalorder %v653, %v654
    %v656 = vsel %vm655, %v653, %v654
    %v657 = vrot.slane %v656, 1
    %vm658 = vcmp.lt.s32.totalorder %v656, %v657
    %v659 = vsel %vm658, %v656, %v657
    %vm660 = vcmp.lt.s32.totalorder %v622, %v626
    %v661 = vsel %vm660, %v622, %v626
    %vm662 = vcmp.lt.s32.totalorder %v624, %v628
    %v663 = vsel %vm662, %v624, %v628
    %vm664 = vcmp.lt.s32.totalorder %v661, %v630
    %v665 = vsel %vm664, %v661, %v630
    %vm666 = vcmp.lt.s32.totalorder %v663, %v632
    %v667 = vsel %vm666, %v663, %v632
    %vm668 = vcmp.lt.s32.totalorder %v665, %v634
    %v669 = vsel %vm668, %v665, %v634
    %vm670 = vcmp.lt.s32.totalorder %v667, %v636
    %v671 = vsel %vm670, %v667, %v636
    %vm672 = vcmp.lt.s32.totalorder %v669, %v671
    %v673 = vsel %vm672, %v669, %v671
    %v674 = vrot.slane %v673, 4
    %vm675 = vcmp.lt.s32.totalorder %v673, %v674
    %v676 = vsel %vm675, %v673, %v674
    %v677 = vrot.slane %v676, 2
    %vm678 = vcmp.lt.s32.totalorder %v676, %v677
    %v679 = vsel %vm678, %v676, %v677
    %v680 = vrot.slane %v679, 1
    %vm681 = vcmp.lt.s32.totalorder %v679, %v680
    %v682 = vsel %vm681, %v679, %v680
    %v683 = vld [vmem:[#allocation6] sm:$0xff]
    %v684 = vld [vmem:[#allocation6 + $0x8] sm:$0xff]
    %vm685 = vcmp.lt.f32.partialorder %v591, %v683
    %vm686 = vcmp.lt.f32.partialorder %v604, %v684
    %v687 = vsel %vm685, %v591, %v683
    %v688 = vsel %vm686, %v604, %v684
    %689 = vst [vmem:[#allocation6] sm:$0xff] %v687
    %690 = vst [vmem:[#allocation6 + $0x8] sm:$0xff] %v688
    %v691 = vld [vmem:[#allocation5] sm:$0xff]
    %v692 = vld [vmem:[#allocation5 + $0x8] sm:$0xff]
    %v693 = vsel %vm685, %v659, %v691
    %v694 = vsel %vm686, %v682, %v692
    %695 = vst [vmem:[#allocation5] sm:$0xff] %v693
    %696 = vst [vmem:[#allocation5 + $0x8] sm:$0xff] %v694
    %s697 = sadd.s32 0, 0
    %s698 = smul.u32 8, %s697
    %p699 = scmp.lt.s32.totalorder %s698, 7
    %s700 = scalar_select %p699, %s698, 7
    %s701 = smul.addr %s700, 8
    %s702 = scalar_lea.vmem %s4, %s701
    // Predicated region
    $region26: #{tpu_custom_call.1} parent=1 // pred_check
      _
    $region27: #{tpu_custom_call.1} parent=1 // pred_check_branch
      %704 = sbr.rel (0) target = $region29
    $region28: #{tpu_custom_call.1} parent=1 // pred_region
      %s705 = sadd.s32 0, 0
      %s706 = smul.u32 8, %s705
    $region29: #{tpu_custom_call.1} parent=1 // pred_fallthru
      _
    // Predicated region
    $region30: #{tpu_custom_call.1} parent=1 // pred_check
      _
    $region31: #{tpu_custom_call.1} parent=1 // pred_check_branch
      %708 = sbr.rel (0) target = $region33
    $region32: #{tpu_custom_call.1} parent=1 // pred_region
      %s710 = ssub.s32 256, 256
      %711 = vsyncadd [#allocation4], %s710
      %s713 = sshll.u32 [#allocation5], 4
      %s714 = int_to_ptr.vmem [resolvable:$true] %s713
      %716 = dma.vmem_to_hbm [thread:$0]  %s714, 256, %s5, [#allocation4]
    $region33: #{tpu_custom_call.1} parent=1 // pred_fallthru
      _
    // Predicated region
    $region34: #{tpu_custom_call.1} parent=1 // pred_check
      _
    $region35: #{tpu_custom_call.1} parent=1 // pred_check_branch
      %718 = sbr.rel (0) target = $region37
    $region36: #{tpu_custom_call.1} parent=1 // pred_region
      %s720 = ssub.s32 256, 256
      %721 = vsyncadd [#allocation7], %s720
      %s723 = sshll.u32 [#allocation6], 4
      %s724 = int_to_ptr.vmem [resolvable:$true] %s723
      %726 = dma.vmem_to_hbm [thread:$0]  %s724, 256, %s6, [#allocation7]
    $region37: #{tpu_custom_call.1} parent=1 // pred_fallthru
      _
    // Predicated region
    $region38: #{tpu_custom_call.1} parent=1 // pred_check
      _
    $region39: #{tpu_custom_call.1} parent=1 // pred_check_branch
      %728 = sbr.rel (0) target = $region41
    $region40: #{tpu_custom_call.1} parent=1 // pred_region
      %s729 = sadd.s32 0, 0
      %s730 = smul.u32 8, %s729
      %p731 = scmp.lt.s32.totalorder %s730, 7
      %s732 = scalar_select %p731, %s730, 7
      %s733 = smul.addr %s732, 8
      %s734 = scalar_lea.vmem %s4, %s733
    $region41: #{tpu_custom_call.1} parent=1 // pred_fallthru
      _
    // Predicated region
    $region42: #{tpu_custom_call.1} parent=1 // pred_check
      _
    $region43: #{tpu_custom_call.1} parent=1 // pred_check_branch
      %736 = sbr.rel (0) target = $region45
    $region44: #{tpu_custom_call.1} parent=1 // pred_region
      %737 = dma.done [#allocation4], 256
    $region45: #{tpu_custom_call.1} parent=1 // pred_fallthru
      _
    // Predicated region
    $region46: #{tpu_custom_call.1} parent=1 // pred_check
      _
    $region47: #{tpu_custom_call.1} parent=1 // pred_check_branch
      %739 = sbr.rel (0) target = $region49
    $region48: #{tpu_custom_call.1} parent=1 // pred_region
      %740 = dma.done [#allocation7], 256
    $region49: #{tpu_custom_call.1} parent=1 // pred_fallthru
      _
    %741 = vsyncpa [#allocation3], 1
    %742 = vsyncpa [#allocation4], 1
    %743 = vsyncpa [#allocation7], 1

</llo_original>
